<compile_context>
chip_gen: v7x
topology: tpu7x:2x2x1
jax: 0.10.0
libtpu: 0.0.40
codegen_flags: <defaults>
</compile_context>

<pallas_src>
import functools

import jax
import jax.numpy as jnp
from jax.experimental import pallas as pl
from jax.experimental.pallas import tpu as pltpu

_HIDDEN = (500, 250, 125)   # logical widths from the PyTorch module
_NEG = -1e30                # masks padded logit lanes before the softmax


def _round_up(n, m):
    return ((n + m - 1) // m) * m


def _mlp_kernel(x_ref,
                w1_ref, b1_ref,
                w2_ref, b2_ref,
                w3_ref, b3_ref,
                w4_ref, b4_ref,
                o_ref):
    """One batch tile: 4 matmuls (bf16 inputs, f32 accum) + bias + f32 softmax."""
    # f32 -> bf16 cast happens here in VMEM; it hides under the layer-1 MXU
    # work instead of being a separate un-hidden XLA pass over x in HBM.
    x = x_ref[...].astype(jnp.bfloat16)

    h = jnp.dot(x, w1_ref[...], preferred_element_type=jnp.float32) + b1_ref[...]
    h = jnp.dot(h.astype(jnp.bfloat16), w2_ref[...],
                preferred_element_type=jnp.float32) + b2_ref[...]
    h = jnp.dot(h.astype(jnp.bfloat16), w3_ref[...],
                preferred_element_type=jnp.float32) + b3_ref[...]
    logits = jnp.dot(h.astype(jnp.bfloat16), w4_ref[...],
                     preferred_element_type=jnp.float32) + b4_ref[...]

    # Numerically stable softmax over the lane-padded feature axis, in f32.
    # Padded lanes carry a -1e30 bias -> exp underflows to exactly 0, so they
    # contribute nothing to the denominator and get zero probability.
    m = jnp.max(logits, axis=-1, keepdims=True)
    e = jnp.exp(logits - m)
    denom = jnp.sum(e, axis=-1, keepdims=True)
    o_ref[...] = (e / denom).astype(o_ref.dtype)   # exact divide: rows sum to 1


def prepare_params(params):
    """Host-side, one-time preparation of kernel parameters.

    Pads every hidden/output feature dim up to a multiple of 128 lanes
    (500->512, 250->256, 125->128, out_dim->128) with zero weight rows/cols,
    gives the padded last-layer bias entries -1e30 (softmax mask), and casts
    weights to bf16 so they live in HBM in the MXU-native input dtype.
    """
    in_dim = params["w1"].shape[0]
    out_dim = params["w4"].shape[1]
    dims = [in_dim, *_HIDDEN, out_dim]
    # input dim stays as-is (full-array block; the MXU pads K internally).
    pdims = [in_dim] + [_round_up(d, 128) for d in dims[1:]]

    kp = {}
    for i in range(1, 5):
        w = params[f"w{i}"].astype(jnp.float32)
        b = params[f"b{i}"].astype(jnp.float32).reshape(1, -1)
        din, dout = dims[i - 1], dims[i]
        pin, pout = pdims[i - 1], pdims[i]
        w_pad = jnp.zeros((pin, pout), jnp.float32).at[:din, :dout].set(w)
        b_fill = _NEG if i == 4 else 0.0
        b_pad = jnp.full((1, pout), b_fill, jnp.float32).at[:, :dout].set(b)
        kp[f"w{i}"] = w_pad.astype(jnp.bfloat16)   # bf16 in HBM across calls
        kp[f"b{i}"] = b_pad                        # biases stay f32
    return kp


def _choose_batch_tiling(batch):
    """Fewest grid steps that fit VMEM.

    A single full-batch tile up to 1024 rows (grid=(1,), no padding, no
    wasted zero-row matmul work).  Beyond that, 512-row tiles with an even
    grid length so dimension_semantics=("parallel",) load-balances the batch
    axis across v7x's two TensorCores (no effect on v5e/v6e).
    """
    if batch <= 1024:
        return batch, 1
    tb = 512
    steps = pl.cdiv(batch, tb)
    if steps % 2:
        steps += 1
    return tb, steps


@functools.partial(jax.jit, static_argnames=("out_dim",))
def mlp_forward(x, kparams, *, out_dim):
    """x: [B, input_dim] f32. kparams: output of prepare_params."""
    batch, in_dim = x.shape
    padded_out = kparams["w4"].shape[1]

    tb, steps = _choose_batch_tiling(batch)
    padded_batch = tb * steps

    xk = x.astype(jnp.float32)          # no-op for f32 inputs
    if padded_batch != batch:
        # Only reachable for large ragged batches (>1024 rows); f32 pad only,
        # the bf16 cast still happens inside the kernel.
        xk = jnp.pad(xk, ((0, padded_batch - batch), (0, 0)))

    ws = [kparams[f"w{i}"] for i in range(1, 5)]
    bs = [kparams[f"b{i}"] for i in range(1, 5)]
    # Weights must already be bf16 in HBM (prepare_params) so no per-call cast
    # kernel is emitted -- this matters most on v5e where the weight DMA
    # dominates at small batch.
    assert all(w.dtype == jnp.bfloat16 for w in ws)
    assert all(b.dtype == jnp.float32 for b in bs)

    # x / out are tiled over the batch; weights / biases use a constant block
    # index so they are DMA'd once and stay resident in VMEM across the grid.
    # (pipeline_mode=pl.Buffered(1) on the pinned specs would drop their
    # unused second buffer; skipped since VMEM is nowhere near a constraint
    # at these sizes, even on v7x's 64 MiB.)
    x_spec = pl.BlockSpec((tb, in_dim), lambda i: (i, 0))
    out_spec = pl.BlockSpec((tb, padded_out), lambda i: (i, 0))
    pinned = lambda a: pl.BlockSpec(a.shape, lambda i: (0, 0))

    operands, in_specs = [xk], [x_spec]
    for w, b in zip(ws, bs):
        operands += [w, b]
        in_specs += [pinned(w), pinned(b)]

    dims = [in_dim] + [w.shape[1] for w in ws]
    flops = 2 * padded_batch * sum(a * b for a, b in zip(dims[:-1], dims[1:]))
    bytes_accessed = (
        xk.size * 4
        + sum(w.size * 2 for w in ws)
        + sum(b.size * 4 for b in bs)
        + padded_batch * padded_out * 4)

    out = pl.pallas_call(
        _mlp_kernel,
        out_shape=jax.ShapeDtypeStruct((padded_batch, padded_out), jnp.float32),
        grid=(steps,),
        in_specs=in_specs,
        out_specs=out_spec,
        compiler_params=pltpu.CompilerParams(
            dimension_semantics=("parallel",),
        ),
        cost_estimate=pl.CostEstimate(
            flops=flops,
            transcendentals=padded_batch * padded_out,
            bytes_accessed=bytes_accessed,
        ),
    )(*operands)

    # Slice off padded batch rows and padded (zero-probability) output lanes.
    return out[:batch, :out_dim]


def init_params(key, input_dim, output_dim):
    """Deterministic init mimicking PyTorch nn.Linear default:
    U(-1/sqrt(fan_in), 1/sqrt(fan_in)) for both weight and bias.
    Weights stored [in, out] (transpose of torch's [out, in])."""
    dims = [input_dim, *_HIDDEN, output_dim]
    params = {}
    for idx in range(4):
        fan_in, fan_out = dims[idx], dims[idx + 1]
        key, kw, kb = jax.random.split(key, 3)
        bound = 1.0 / (fan_in ** 0.5)
        params[f"w{idx + 1}"] = jax.random.uniform(
            kw, (fan_in, fan_out), jnp.float32, minval=-bound, maxval=bound)
        params[f"b{idx + 1}"] = jax.random.uniform(
            kb, (1, fan_out), jnp.float32, minval=-bound, maxval=bound)
    return params


if __name__ == "__main__":
    INPUT_DIM = 784   # MNIST-style flattened 28x28 image
    OUTPUT_DIM = 10   # 10 classes
    BATCH = 32        # small demo batch -> single tile, grid=(1,)

    key = jax.random.PRNGKey(0)
    key, kx = jax.random.split(key)
    x = jax.random.normal(kx, (BATCH, INPUT_DIM), jnp.float32)

    params = init_params(key, INPUT_DIM, OUTPUT_DIM)
    kparams = prepare_params(params)   # pad + bf16-cast once, host-side

    out = jax.block_until_ready(mlp_forward(x, kparams, out_dim=OUTPUT_DIM))

    # Plain-JAX reference with the same precision discipline
    # (bf16 matmul inputs, f32 accumulation, f32 softmax, unpadded params).
    def ref_forward(xf, p):
        h = xf.astype(jnp.bfloat16)
        for i in range(1, 5):
            w = p[f"w{i}"].astype(jnp.bfloat16)
            h = jnp.dot(h, w, preferred_element_type=jnp.float32) + p[f"b{i}"]
            if i < 4:
                h = h.astype(jnp.bfloat16)
        return jax.nn.softmax(h, axis=-1)

    ref = ref_forward(x, params)

    assert out.shape == (BATCH, OUTPUT_DIM)
    assert bool(jnp.allclose(jnp.sum(out, axis=-1), 1.0, atol=1e-4))
    assert bool(jnp.allclose(out, ref, atol=5e-3, rtol=5e-3))

    print("KERNEL_OK")
</pallas_src>

<mosaic_0001>
module attributes {stable_mosaic.version = 11 : i64} {
  func.func @_mlp_kernel(%arg0: i32, %arg1: memref<32x784xf32, #tpu.memory_space<vmem>>, %arg2: memref<784x512xbf16, #tpu.memory_space<vmem>>, %arg3: memref<1x512xf32, #tpu.memory_space<vmem>>, %arg4: memref<512x256xbf16, #tpu.memory_space<vmem>>, %arg5: memref<1x256xf32, #tpu.memory_space<vmem>>, %arg6: memref<256x128xbf16, #tpu.memory_space<vmem>>, %arg7: memref<1x128xf32, #tpu.memory_space<vmem>>, %arg8: memref<128x128xbf16, #tpu.memory_space<vmem>>, %arg9: memref<1x128xf32, #tpu.memory_space<vmem>>, %arg10: memref<32x128xf32, #tpu.memory_space<vmem>>) attributes {dimension_semantics = [#tpu.dimension_semantics<parallel>], iteration_bounds = array<i64: 1>, scalar_prefetch = 0 : i64, scratch_operands = 0 : i64, tpu.core_type = #tpu.core_type<tc>, window_params = [{transform_indices = @transform_0, window_bounds = array<i64: 32, 784>}, {pipeline_mode = #tpu.pipeline_mode<synchronous>, transform_indices = @transform_1, window_bounds = array<i64: 784, 512>}, {pipeline_mode = #tpu.pipeline_mode<synchronous>, transform_indices = @transform_2, window_bounds = array<i64: 1, 512>}, {pipeline_mode = #tpu.pipeline_mode<synchronous>, transform_indices = @transform_3, window_bounds = array<i64: 512, 256>}, {pipeline_mode = #tpu.pipeline_mode<synchronous>, transform_indices = @transform_4, window_bounds = array<i64: 1, 256>}, {pipeline_mode = #tpu.pipeline_mode<synchronous>, transform_indices = @transform_5, window_bounds = array<i64: 256, 128>}, {pipeline_mode = #tpu.pipeline_mode<synchronous>, transform_indices = @transform_6, window_bounds = array<i64: 1, 128>}, {pipeline_mode = #tpu.pipeline_mode<synchronous>, transform_indices = @transform_7, window_bounds = array<i64: 128, 128>}, {pipeline_mode = #tpu.pipeline_mode<synchronous>, transform_indices = @transform_8, window_bounds = array<i64: 1, 128>}, {transform_indices = @transform_9, window_bounds = array<i64: 32, 128>}]} {
    %c0 = arith.constant 0 : index
    %c0_0 = arith.constant 0 : index
    %0 = vector.load %arg1[%c0, %c0_0] : memref<32x784xf32, #tpu.memory_space<vmem>>, vector<32x784xf32>
    %1 = arith.truncf %0 : vector<32x784xf32> to vector<32x784xbf16>
    %c0_1 = arith.constant 0 : index
    %c0_2 = arith.constant 0 : index
    %2 = vector.load %arg2[%c0_1, %c0_2] : memref<784x512xbf16, #tpu.memory_space<vmem>>, vector<784x512xbf16>
    %cst = arith.constant dense<0.000000e+00> : vector<32x512xf32>
    %3 = tpu.matmul %1, %2, %cst {dimension_numbers = #tpu.dot_dimension_numbers<[1], [0], [0], [1], [0, 0, 1, 1], [], []>} : vector<32x784xbf16>, vector<784x512xbf16>, vector<32x512xf32> -> vector<32x512xf32>
    %c0_3 = arith.constant 0 : index
    %c0_4 = arith.constant 0 : index
    %4 = vector.load %arg3[%c0_3, %c0_4] : memref<1x512xf32, #tpu.memory_space<vmem>>, vector<1x512xf32>
    %5 = vector.broadcast %4 : vector<1x512xf32> to vector<32x512xf32>
    %6 = arith.addf %3, %5 : vector<32x512xf32>
    %7 = arith.truncf %6 : vector<32x512xf32> to vector<32x512xbf16>
    %c0_5 = arith.constant 0 : index
    %c0_6 = arith.constant 0 : index
    %8 = vector.load %arg4[%c0_5, %c0_6] : memref<512x256xbf16, #tpu.memory_space<vmem>>, vector<512x256xbf16>
    %cst_7 = arith.constant dense<0.000000e+00> : vector<32x256xf32>
    %9 = tpu.matmul %7, %8, %cst_7 {dimension_numbers = #tpu.dot_dimension_numbers<[1], [0], [0], [1], [0, 0, 1, 1], [], []>} : vector<32x512xbf16>, vector<512x256xbf16>, vector<32x256xf32> -> vector<32x256xf32>
    %c0_8 = arith.constant 0 : index
    %c0_9 = arith.constant 0 : index
    %10 = vector.load %arg5[%c0_8, %c0_9] : memref<1x256xf32, #tpu.memory_space<vmem>>, vector<1x256xf32>
    %11 = vector.broadcast %10 : vector<1x256xf32> to vector<32x256xf32>
    %12 = arith.addf %9, %11 : vector<32x256xf32>
    %13 = arith.truncf %12 : vector<32x256xf32> to vector<32x256xbf16>
    %c0_10 = arith.constant 0 : index
    %c0_11 = arith.constant 0 : index
    %14 = vector.load %arg6[%c0_10, %c0_11] : memref<256x128xbf16, #tpu.memory_space<vmem>>, vector<256x128xbf16>
    %cst_12 = arith.constant dense<0.000000e+00> : vector<32x128xf32>
    %15 = tpu.matmul %13, %14, %cst_12 {dimension_numbers = #tpu.dot_dimension_numbers<[1], [0], [0], [1], [0, 0, 1, 1], [], []>} : vector<32x256xbf16>, vector<256x128xbf16>, vector<32x128xf32> -> vector<32x128xf32>
    %c0_13 = arith.constant 0 : index
    %c0_14 = arith.constant 0 : index
    %16 = vector.load %arg7[%c0_13, %c0_14] : memref<1x128xf32, #tpu.memory_space<vmem>>, vector<1x128xf32>
    %17 = vector.broadcast %16 : vector<1x128xf32> to vector<32x128xf32>
    %18 = arith.addf %15, %17 : vector<32x128xf32>
    %19 = arith.truncf %18 : vector<32x128xf32> to vector<32x128xbf16>
    %c0_15 = arith.constant 0 : index
    %c0_16 = arith.constant 0 : index
    %20 = vector.load %arg8[%c0_15, %c0_16] : memref<128x128xbf16, #tpu.memory_space<vmem>>, vector<128x128xbf16>
    %cst_17 = arith.constant dense<0.000000e+00> : vector<32x128xf32>
    %21 = tpu.matmul %19, %20, %cst_17 {dimension_numbers = #tpu.dot_dimension_numbers<[1], [0], [0], [1], [0, 0, 1, 1], [], []>} : vector<32x128xbf16>, vector<128x128xbf16>, vector<32x128xf32> -> vector<32x128xf32>
    %c0_18 = arith.constant 0 : index
    %c0_19 = arith.constant 0 : index
    %22 = vector.load %arg9[%c0_18, %c0_19] : memref<1x128xf32, #tpu.memory_space<vmem>>, vector<1x128xf32>
    %23 = vector.broadcast %22 : vector<1x128xf32> to vector<32x128xf32>
    %24 = arith.addf %21, %23 : vector<32x128xf32>
    %cst_20 = arith.constant dense<0xFF800000> : vector<32xf32>
    %25 = vector.multi_reduction <maximumf>, %24, %cst_20 [1] : vector<32x128xf32> to vector<32xf32>
    %26 = vector.shape_cast %25 : vector<32xf32> to vector<32x1xf32>
    %27 = vector.broadcast %26 : vector<32x1xf32> to vector<32x128xf32>
    %28 = arith.subf %24, %27 : vector<32x128xf32>
    %29 = math.exp %28 : vector<32x128xf32>
    %cst_21 = arith.constant dense<0.000000e+00> : vector<32xf32>
    %30 = vector.multi_reduction <add>, %29, %cst_21 [1] : vector<32x128xf32> to vector<32xf32>
    %31 = vector.shape_cast %30 : vector<32xf32> to vector<32x1xf32>
    %32 = vector.broadcast %31 : vector<32x1xf32> to vector<32x128xf32>
    %33 = arith.divf %29, %32 : vector<32x128xf32>
    %c0_22 = arith.constant 0 : index
    %c0_23 = arith.constant 0 : index
    %34 = vector.load %arg10[%c0_22, %c0_23] : memref<32x128xf32, #tpu.memory_space<vmem>>, vector<32x128xf32>
    tpu.vector_store %arg10[%c0_22, %c0_23], %33 {strides = array<i32>} : memref<32x128xf32, #tpu.memory_space<vmem>>, vector<32x128xf32>,
    return
  }
  func.func @transform_0(%arg0: i32) -> (i32, i32) {
    %c0_i32 = arith.constant 0 : i32
    %c0_i32_0 = arith.constant 0 : i32
    return %arg0, %c0_i32 : i32, i32
  }
  func.func @transform_1(%arg0: i32) -> (i32, i32) {
    %c0_i32 = arith.constant 0 : i32
    %c0_i32_0 = arith.constant 0 : i32
    %c0_i32_1 = arith.constant 0 : i32
    return %c0_i32, %c0_i32_0 : i32, i32
  }
  func.func @transform_2(%arg0: i32) -> (i32, i32) {
    %c0_i32 = arith.constant 0 : i32
    %c0_i32_0 = arith.constant 0 : i32
    %c0_i32_1 = arith.constant 0 : i32
    return %c0_i32, %c0_i32_0 : i32, i32
  }
  func.func @transform_3(%arg0: i32) -> (i32, i32) {
    %c0_i32 = arith.constant 0 : i32
    %c0_i32_0 = arith.constant 0 : i32
    %c0_i32_1 = arith.constant 0 : i32
    return %c0_i32, %c0_i32_0 : i32, i32
  }
  func.func @transform_4(%arg0: i32) -> (i32, i32) {
    %c0_i32 = arith.constant 0 : i32
    %c0_i32_0 = arith.constant 0 : i32
    %c0_i32_1 = arith.constant 0 : i32
    return %c0_i32, %c0_i32_0 : i32, i32
  }
  func.func @transform_5(%arg0: i32) -> (i32, i32) {
    %c0_i32 = arith.constant 0 : i32
    %c0_i32_0 = arith.constant 0 : i32
    %c0_i32_1 = arith.constant 0 : i32
    return %c0_i32, %c0_i32_0 : i32, i32
  }
  func.func @transform_6(%arg0: i32) -> (i32, i32) {
    %c0_i32 = arith.constant 0 : i32
    %c0_i32_0 = arith.constant 0 : i32
    %c0_i32_1 = arith.constant 0 : i32
    return %c0_i32, %c0_i32_0 : i32, i32
  }
  func.func @transform_7(%arg0: i32) -> (i32, i32) {
    %c0_i32 = arith.constant 0 : i32
    %c0_i32_0 = arith.constant 0 : i32
    %c0_i32_1 = arith.constant 0 : i32
    return %c0_i32, %c0_i32_0 : i32, i32
  }
  func.func @transform_8(%arg0: i32) -> (i32, i32) {
    %c0_i32 = arith.constant 0 : i32
    %c0_i32_0 = arith.constant 0 : i32
    %c0_i32_1 = arith.constant 0 : i32
    return %c0_i32, %c0_i32_0 : i32, i32
  }
  func.func @transform_9(%arg0: i32) -> (i32, i32) {
    %c0_i32 = arith.constant 0 : i32
    %c0_i32_0 = arith.constant 0 : i32
    return %arg0, %c0_i32 : i32, i32
  }
}

</mosaic_0001>

<llo_original>
// kernel: mlp_forward.1
$region0: #{mlp_forward.1}
  #allocation0 [shape = 'u32[]', space=smem, size = 0x4, offset = 0x4, fixed_abs, tag = 'smem constant byte address 0x4 - core index']
  #allocation1 [shape = 'u32[144,128]{1,0:T(1,128)}', space=vmem, size = 0x12000, scoped, tag = 'internal scratch']
  %s0 = inlined_call_operand.hbm [shape: f32[32,784], index: 0, kind: input, shape index: {}]
  %s1 = inlined_call_operand.hbm [shape: bf16[784,512], index: 1, kind: input, shape index: {}]
  %s2 = inlined_call_operand.hbm [shape: f32[1,512], index: 2, kind: input, shape index: {}]
  %s3 = inlined_call_operand.hbm [shape: bf16[512,256], index: 3, kind: input, shape index: {}]
  %s4 = inlined_call_operand.vmem [shape: f32[1,256], index: 4, kind: input, shape index: {}]
  %s5 = inlined_call_operand.hbm [shape: bf16[256,128], index: 5, kind: input, shape index: {}]
  %s6 = inlined_call_operand.vmem [shape: f32[1,128], index: 6, kind: input, shape index: {}]
  %s7 = inlined_call_operand.hbm [shape: bf16[128,128], index: 7, kind: input, shape index: {}]
  %s8 = inlined_call_operand.vmem [shape: f32[1,128], index: 8, kind: input, shape index: {}]
  %s9 = inlined_call_operand.vmem [shape: f32[32,128], index: 9, kind: output, shape index: {}]
  %s10 = sld [smem:[#allocation0]]
  $region70: #{mlp_forward.1} parent=0
    _
  %s12 = ssub.s32 1, %s10
  %s13 = scalar_select 0, %s12, %s10
  $region1: #{mlp_forward.1} parent=0
    #allocation2 [shape = 'u8[114688]{0}', space=vmem, size = 0x1c000, scoped, tag = 'input window, operand 0, single buffered']
    #allocation3 [shape = 's32[1]{0}', space=sflag, size = 0x4, scoped, tag = 'scoped memory for mlp_forward.1']
    #allocation4 [shape = 'u8[802816]{0}', space=vmem, size = 0xc4000, scoped, tag = 'input window, operand 1, single buffered']
    #allocation5 [shape = 's32[1]{0}', space=sflag, size = 0x4, scoped, tag = 'scoped memory for mlp_forward.1']
    #allocation6 [shape = 'u8[2048]{0}', space=vmem, size = 0x800, scoped, tag = 'input window, operand 2, single buffered']
    #allocation7 [shape = 'u8[262144]{0}', space=vmem, size = 0x40000, scoped, tag = 'input window, operand 3, single buffered']
    #allocation8 [shape = 's32[1]{0}', space=sflag, size = 0x4, scoped, tag = 'scoped memory for mlp_forward.1']
    #allocation9 [shape = 'u8[65536]{0}', space=vmem, size = 0x10000, scoped, tag = 'input window, operand 5, single buffered']
    #allocation10 [shape = 'u8[32768]{0}', space=vmem, size = 0x8000, scoped, tag = 'input window, operand 7, single buffered']
    #allocation11 [shape = 's32[1]{0}', space=sflag, size = 0x4, scoped, tag = 'scoped memory for mlp_forward.1']
    %14 = vsyncpa [#allocation3], 0
    %15 = vsyncpa [#allocation5], 0
    %16 = vsyncpa [#allocation8], 0
    %17 = vsyncpa [#allocation11], 0
    // Predicated region
    $region2: #{mlp_forward.1} parent=1 // pred_check
      _
    $region3: #{mlp_forward.1} parent=1 // pred_check_branch
      %19 = sbr.rel (0) target = $region5
    $region4: #{mlp_forward.1} parent=1 // pred_region
      %s21 = ssub.s32 3584, 3584
      %22 = vsyncadd [#allocation3], %s21
      %s23 = sshll.u32 [#allocation2], 4
      %s24 = int_to_ptr.vmem [resolvable:$true] %s23
      %29 = dma.hbm_to_vmem [thread:$0]  %s0, 3584, %s24, [#allocation3], 896, 896, 56
    $region5: #{mlp_forward.1} parent=1 // pred_fallthru
      _
    // Predicated region
    $region6: #{mlp_forward.1} parent=1 // pred_check
      _
    $region7: #{mlp_forward.1} parent=1 // pred_check_branch
      %31 = sbr.rel (0) target = $region9
    $region8: #{mlp_forward.1} parent=1 // pred_region
      %s33 = ssub.s32 25088, 25088
      %34 = vsyncadd [#allocation5], %s33
      %s35 = sshll.u32 [#allocation4], 4
      %s36 = int_to_ptr.vmem [resolvable:$true] %s35
      %41 = dma.hbm_to_vmem [thread:$0]  %s1, 25088, %s36, [#allocation5], 256, 256, 16
    $region9: #{mlp_forward.1} parent=1 // pred_fallthru
      _
    // Predicated region
    $region10: #{mlp_forward.1} parent=1 // pred_check
      _
    $region11: #{mlp_forward.1} parent=1 // pred_check_branch
      %43 = sbr.rel (0) target = $region13
    $region12: #{mlp_forward.1} parent=1 // pred_region
      %s45 = ssub.s32 64, 64
      %46 = vsyncadd [#allocation5], %s45
      %s48 = sshll.u32 [#allocation6], 4
      %s49 = int_to_ptr.vmem [resolvable:$true] %s48
      %51 = dma.hbm_to_vmem [thread:$0]  %s2, 64, %s49, [#allocation5]
    $region13: #{mlp_forward.1} parent=1 // pred_fallthru
      _
    // Predicated region
    $region14: #{mlp_forward.1} parent=1 // pred_check
      _
    $region15: #{mlp_forward.1} parent=1 // pred_check_branch
      %53 = sbr.rel (0) target = $region17
    $region16: #{mlp_forward.1} parent=1 // pred_region
      %s55 = ssub.s32 8192, 8192
      %56 = vsyncadd [#allocation8], %s55
      %s57 = sshll.u32 [#allocation7], 4
      %s58 = int_to_ptr.vmem [resolvable:$true] %s57
      %63 = dma.hbm_to_vmem [thread:$0]  %s3, 8192, %s58, [#allocation8], 128, 128, 8
    $region17: #{mlp_forward.1} parent=1 // pred_fallthru
      _
    // Predicated region
    $region18: #{mlp_forward.1} parent=1 // pred_check
      _
    $region19: #{mlp_forward.1} parent=1 // pred_check_branch
      %65 = sbr.rel (0) target = $region21
    $region20: #{mlp_forward.1} parent=1 // pred_region
      _
    $region21: #{mlp_forward.1} parent=1 // pred_fallthru
      _
    // Predicated region
    $region22: #{mlp_forward.1} parent=1 // pred_check
      _
    $region23: #{mlp_forward.1} parent=1 // pred_check_branch
      %67 = sbr.rel (0) target = $region25
    $region24: #{mlp_forward.1} parent=1 // pred_region
      %s69 = ssub.s32 2048, 2048
      %70 = vsyncadd [#allocation8], %s69
      %s71 = sshll.u32 [#allocation9], 4
      %s72 = int_to_ptr.vmem [resolvable:$true] %s71
      %77 = dma.hbm_to_vmem [thread:$0]  %s5, 2048, %s72, [#allocation8], 64, 64, 4
    $region25: #{mlp_forward.1} parent=1 // pred_fallthru
      _
    // Predicated region
    $region26: #{mlp_forward.1} parent=1 // pred_check
      _
    $region27: #{mlp_forward.1} parent=1 // pred_check_branch
      %79 = sbr.rel (0) target = $region29
    $region28: #{mlp_forward.1} parent=1 // pred_region
      _
    $region29: #{mlp_forward.1} parent=1 // pred_fallthru
      _
    // Predicated region
    $region30: #{mlp_forward.1} parent=1 // pred_check
      _
    $region31: #{mlp_forward.1} parent=1 // pred_check_branch
      %81 = sbr.rel (0) target = $region33
    $region32: #{mlp_forward.1} parent=1 // pred_region
      %s83 = ssub.s32 1024, 1024
      %84 = vsyncadd [#allocation11], %s83
      %s85 = sshll.u32 [#allocation10], 4
      %s86 = int_to_ptr.vmem [resolvable:$true] %s85
      %91 = dma.hbm_to_vmem [thread:$0]  %s7, 1024, %s86, [#allocation11], 64, 64, 4
    $region33: #{mlp_forward.1} parent=1 // pred_fallthru
      _
    // Predicated region
    $region34: #{mlp_forward.1} parent=1 // pred_check
      _
    $region35: #{mlp_forward.1} parent=1 // pred_check_branch
      %93 = sbr.rel (0) target = $region37
    $region36: #{mlp_forward.1} parent=1 // pred_region
      _
    $region37: #{mlp_forward.1} parent=1 // pred_fallthru
      _
    // Predicated region
    $region38: #{mlp_forward.1} parent=1 // pred_check
      _
    $region39: #{mlp_forward.1} parent=1 // pred_check_branch
      %95 = sbr.rel (0) target = $region41
    $region40: #{mlp_forward.1} parent=1 // pred_region
      %96 = dma.done [#allocation3], 3584
    $region41: #{mlp_forward.1} parent=1 // pred_fallthru
      _
    // Predicated region
    $region42: #{mlp_forward.1} parent=1 // pred_check
      _
    $region43: #{mlp_forward.1} parent=1 // pred_check_branch
      %98 = sbr.rel (0) target = $region45
    $region44: #{mlp_forward.1} parent=1 // pred_region
      %99 = dma.done [#allocation5], 25088
    $region45: #{mlp_forward.1} parent=1 // pred_fallthru
      _
    // Predicated region
    $region46: #{mlp_forward.1} parent=1 // pred_check
      _
    $region47: #{mlp_forward.1} parent=1 // pred_check_branch
      %101 = sbr.rel (0) target = $region49
    $region48: #{mlp_forward.1} parent=1 // pred_region
      %102 = dma.done [#allocation5], 64
    $region49: #{mlp_forward.1} parent=1 // pred_fallthru
      _
    // Predicated region
    $region50: #{mlp_forward.1} parent=1 // pred_check
      _
    $region51: #{mlp_forward.1} parent=1 // pred_check_branch
      %104 = sbr.rel (0) target = $region53
    $region52: #{mlp_forward.1} parent=1 // pred_region
      %105 = dma.done [#allocation8], 8192
    $region53: #{mlp_forward.1} parent=1 // pred_fallthru
      _
    // Predicated region
    $region54: #{mlp_forward.1} parent=1 // pred_check
      _
    $region55: #{mlp_forward.1} parent=1 // pred_check_branch
      %107 = sbr.rel (0) target = $region57
    $region56: #{mlp_forward.1} parent=1 // pred_region
      %108 = dma.done [#allocation8], 2048
    $region57: #{mlp_forward.1} parent=1 // pred_fallthru
      _
    // Predicated region
    $region58: #{mlp_forward.1} parent=1 // pred_check
      _
    $region59: #{mlp_forward.1} parent=1 // pred_check_branch
      %110 = sbr.rel (0) target = $region61
    $region60: #{mlp_forward.1} parent=1 // pred_region
      %111 = dma.done [#allocation11], 1024
    $region61: #{mlp_forward.1} parent=1 // pred_fallthru
      _
    %v113 = vld [vmem:[#allocation2] sm:$0xff]
    %v114 = vld [vmem:[#allocation2 + $0x8] sm:$0xff]
    %v115 = vld [vmem:[#allocation2 + $0x10] sm:$0xff]
    %v116 = vld [vmem:[#allocation2 + $0x18] sm:$0xff]
    %v117 = vld [vmem:[#allocation2 + $0x20] sm:$0xff]
    %v118 = vld [vmem:[#allocation2 + $0x28] sm:$0xff]
    %v119 = vld [vmem:[#allocation2 + $0x30] sm:$0xff]
    %v120 = vld [vmem:[#allocation2 + $0x38] sm:$0xff]
    %v121 = vld [vmem:[#allocation2 + $0x40] sm:$0xff]
    %v122 = vld [vmem:[#allocation2 + $0x48] sm:$0xff]
    %v123 = vld [vmem:[#allocation2 + $0x50] sm:$0xff]
    %v124 = vld [vmem:[#allocation2 + $0x58] sm:$0xff]
    %v125 = vld [vmem:[#allocation2 + $0x60] sm:$0xff]
    %v126 = vld [vmem:[#allocation2 + $0x68] sm:$0xff]
    %v127 = vld [vmem:[#allocation2 + $0x70] sm:$0xff]
    %v128 = vld [vmem:[#allocation2 + $0x78] sm:$0xff]
    %v129 = vld [vmem:[#allocation2 + $0x80] sm:$0xff]
    %v130 = vld [vmem:[#allocation2 + $0x88] sm:$0xff]
    %v131 = vld [vmem:[#allocation2 + $0x90] sm:$0xff]
    %v132 = vld [vmem:[#allocation2 + $0x98] sm:$0xff]
    %v133 = vld [vmem:[#allocation2 + $0xa0] sm:$0xff]
    %v134 = vld [vmem:[#allocation2 + $0xa8] sm:$0xff]
    %v135 = vld [vmem:[#allocation2 + $0xb0] sm:$0xff]
    %v136 = vld [vmem:[#allocation2 + $0xb8] sm:$0xff]
    %v137 = vld [vmem:[#allocation2 + $0xc0] sm:$0xff]
    %v138 = vld [vmem:[#allocation2 + $0xc8] sm:$0xff]
    %v139 = vld [vmem:[#allocation2 + $0xd0] sm:$0xff]
    %v140 = vld [vmem:[#allocation2 + $0xd8] sm:$0xff]
    %v141 = vpack.c.bf16 %v120, %v113
    %v142 = vpack.c.bf16 %v121, %v114
    %v143 = vpack.c.bf16 %v122, %v115
    %v144 = vpack.c.bf16 %v123, %v116
    %v145 = vpack.c.bf16 %v124, %v117
    %v146 = vpack.c.bf16 %v125, %v118
    %v147 = vpack.c.bf16 %v126, %v119
    %v148 = vpack.c.bf16 %v134, %v127
    %v149 = vpack.c.bf16 %v135, %v128
    %v150 = vpack.c.bf16 %v136, %v129
    %v151 = vpack.c.bf16 %v137, %v130
    %v152 = vpack.c.bf16 %v138, %v131
    %v153 = vpack.c.bf16 %v139, %v132
    %v154 = vpack.c.bf16 %v140, %v133
    %v155 = vld [vmem:[#allocation4] sm:$0xff]
    %v156 = vld [vmem:[#allocation4 + $0x8] sm:$0xff]
    %v157 = vld [vmem:[#allocation4 + $0x10] sm:$0xff]
    %v158 = vld [vmem:[#allocation4 + $0x18] sm:$0xff]
    %v159 = vld [vmem:[#allocation4 + $0x20] sm:$0xff]
    %v160 = vld [vmem:[#allocation4 + $0x28] sm:$0xff]
    %v161 = vld [vmem:[#allocation4 + $0x30] sm:$0xff]
    %v162 = vld [vmem:[#allocation4 + $0x38] sm:$0xff]
    %v163 = vld [vmem:[#allocation4 + $0x40] sm:$0xff]
    %v164 = vld [vmem:[#allocation4 + $0x48] sm:$0xff]
    %v165 = vld [vmem:[#allocation4 + $0x50] sm:$0xff]
    %v166 = vld [vmem:[#allocation4 + $0x58] sm:$0xff]
    %v167 = vld [vmem:[#allocation4 + $0x60] sm:$0xff]
    %v168 = vld [vmem:[#allocation4 + $0x68] sm:$0xff]
    %v169 = vld [vmem:[#allocation4 + $0x70] sm:$0xff]
    %v170 = vld [vmem:[#allocation4 + $0x78] sm:$0xff]
    %v171 = vld [vmem:[#allocation4 + $0x80] sm:$0xff]
    %v172 = vld [vmem:[#allocation4 + $0x88] sm:$0xff]
    %v173 = vld [vmem:[#allocation4 + $0x90] sm:$0xff]
    %v174 = vld [vmem:[#allocation4 + $0x98] sm:$0xff]
    %v175 = vld [vmem:[#allocation4 + $0xa0] sm:$0xff]
    %v176 = vld [vmem:[#allocation4 + $0xa8] sm:$0xff]
    %v177 = vld [vmem:[#allocation4 + $0xb0] sm:$0xff]
    %v178 = vld [vmem:[#allocation4 + $0xb8] sm:$0xff]
    %v179 = vld [vmem:[#allocation4 + $0xc0] sm:$0xff]
    %v180 = vld [vmem:[#allocation4 + $0xc8] sm:$0xff]
    %v181 = vld [vmem:[#allocation4 + $0xd0] sm:$0xff]
    %v182 = vld [vmem:[#allocation4 + $0xd8] sm:$0xff]
    %v183 = vld [vmem:[#allocation4 + $0xe0] sm:$0xff]
    %v184 = vld [vmem:[#allocation4 + $0xe8] sm:$0xff]
    %v185 = vld [vmem:[#allocation4 + $0xf0] sm:$0xff]
    %v186 = vld [vmem:[#allocation4 + $0xf8] sm:$0xff]
    %v187 = vld [vmem:[#allocation4 + $0x100] sm:$0xff]
    %v188 = vld [vmem:[#allocation4 + $0x108] sm:$0xff]
    %v189 = vld [vmem:[#allocation4 + $0x110] sm:$0xff]
    %v190 = vld [vmem:[#allocation4 + $0x118] sm:$0xff]
    %v191 = vld [vmem:[#allocation4 + $0x120] sm:$0xff]
    %v192 = vld [vmem:[#allocation4 + $0x128] sm:$0xff]
    %v193 = vld [vmem:[#allocation4 + $0x130] sm:$0xff]
    %v194 = vld [vmem:[#allocation4 + $0x138] sm:$0xff]
    %v195 = vld [vmem:[#allocation4 + $0x140] sm:$0xff]
    %v196 = vld [vmem:[#allocation4 + $0x148] sm:$0xff]
    %v197 = vld [vmem:[#allocation4 + $0x150] sm:$0xff]
    %v198 = vld [vmem:[#allocation4 + $0x158] sm:$0xff]
    %v199 = vld [vmem:[#allocation4 + $0x160] sm:$0xff]
    %v200 = vld [vmem:[#allocation4 + $0x168] sm:$0xff]
    %v201 = vld [vmem:[#allocation4 + $0x170] sm:$0xff]
    %v202 = vld [vmem:[#allocation4 + $0x178] sm:$0xff]
    %v203 = vld [vmem:[#allocation4 + $0x180] sm:$0xff]
    %v204 = vld [vmem:[#allocation4 + $0x188] sm:$0xff]
    %v205 = vld [vmem:[#allocation4 + $0x190] sm:$0xff]
    %v206 = vld [vmem:[#allocation4 + $0x198] sm:$0xff]
    %v207 = vld [vmem:[#allocation4 + $0x1a0] sm:$0xff]
    %v208 = vld [vmem:[#allocation4 + $0x1a8] sm:$0xff]
    %v209 = vld [vmem:[#allocation4 + $0x1b0] sm:$0xff]
    %v210 = vld [vmem:[#allocation4 + $0x1b8] sm:$0xff]
    %v211 = vld [vmem:[#allocation4 + $0x1c0] sm:$0xff]
    %v212 = vld [vmem:[#allocation4 + $0x1c8] sm:$0xff]
    %v213 = vld [vmem:[#allocation4 + $0x1d0] sm:$0xff]
    %v214 = vld [vmem:[#allocation4 + $0x1d8] sm:$0xff]
    %v215 = vld [vmem:[#allocation4 + $0x1e0] sm:$0xff]
    %v216 = vld [vmem:[#allocation4 + $0x1e8] sm:$0xff]
    %v217 = vld [vmem:[#allocation4 + $0x1f0] sm:$0xff]
    %v218 = vld [vmem:[#allocation4 + $0x1f8] sm:$0xff]
    %v219 = vld [vmem:[#allocation4 + $0x200] sm:$0xff]
    %v220 = vld [vmem:[#allocation4 + $0x208] sm:$0xff]
    %v221 = vld [vmem:[#allocation4 + $0x210] sm:$0xff]
    %v222 = vld [vmem:[#allocation4 + $0x218] sm:$0xff]
    %v223 = vld [vmem:[#allocation4 + $0x220] sm:$0xff]
    %v224 = vld [vmem:[#allocation4 + $0x228] sm:$0xff]
    %v225 = vld [vmem:[#allocation4 + $0x230] sm:$0xff]
    %v226 = vld [vmem:[#allocation4 + $0x238] sm:$0xff]
    %v227 = vld [vmem:[#allocation4 + $0x240] sm:$0xff]
    %v228 = vld [vmem:[#allocation4 + $0x248] sm:$0xff]
    %v229 = vld [vmem:[#allocation4 + $0x250] sm:$0xff]
    %v230 = vld [vmem:[#allocation4 + $0x258] sm:$0xff]
    %v231 = vld [vmem:[#allocation4 + $0x260] sm:$0xff]
    %v232 = vld [vmem:[#allocation4 + $0x268] sm:$0xff]
    %v233 = vld [vmem:[#allocation4 + $0x270] sm:$0xff]
    %v234 = vld [vmem:[#allocation4 + $0x278] sm:$0xff]
    %v235 = vld [vmem:[#allocation4 + $0x280] sm:$0xff]
    %v236 = vld [vmem:[#allocation4 + $0x288] sm:$0xff]
    %v237 = vld [vmem:[#allocation4 + $0x290] sm:$0xff]
    %v238 = vld [vmem:[#allocation4 + $0x298] sm:$0xff]
    %v239 = vld [vmem:[#allocation4 + $0x2a0] sm:$0xff]
    %v240 = vld [vmem:[#allocation4 + $0x2a8] sm:$0xff]
    %v241 = vld [vmem:[#allocation4 + $0x2b0] sm:$0xff]
    %v242 = vld [vmem:[#allocation4 + $0x2b8] sm:$0xff]
    %v243 = vld [vmem:[#allocation4 + $0x2c0] sm:$0xff]
    %v244 = vld [vmem:[#allocation4 + $0x2c8] sm:$0xff]
    %v245 = vld [vmem:[#allocation4 + $0x2d0] sm:$0xff]
    %v246 = vld [vmem:[#allocation4 + $0x2d8] sm:$0xff]
    %v247 = vld [vmem:[#allocation4 + $0x2e0] sm:$0xff]
    %v248 = vld [vmem:[#allocation4 + $0x2e8] sm:$0xff]
    %v249 = vld [vmem:[#allocation4 + $0x2f0] sm:$0xff]
    %v250 = vld [vmem:[#allocation4 + $0x2f8] sm:$0xff]
    %v251 = vld [vmem:[#allocation4 + $0x300] sm:$0xff]
    %v252 = vld [vmem:[#allocation4 + $0x308] sm:$0xff]
    %v253 = vld [vmem:[#allocation4 + $0x310] sm:$0xff]
    %v254 = vld [vmem:[#allocation4 + $0x318] sm:$0xff]
    %v255 = vld [vmem:[#allocation4 + $0x320] sm:$0xff]
    %v256 = vld [vmem:[#allocation4 + $0x328] sm:$0xff]
    %v257 = vld [vmem:[#allocation4 + $0x330] sm:$0xff]
    %v258 = vld [vmem:[#allocation4 + $0x338] sm:$0xff]
    %v259 = vld [vmem:[#allocation4 + $0x340] sm:$0xff]
    %v260 = vld [vmem:[#allocation4 + $0x348] sm:$0xff]
    %v261 = vld [vmem:[#allocation4 + $0x350] sm:$0xff]
    %v262 = vld [vmem:[#allocation4 + $0x358] sm:$0xff]
    %v263 = vld [vmem:[#allocation4 + $0x360] sm:$0xff]
    %v264 = vld [vmem:[#allocation4 + $0x368] sm:$0xff]
    %v265 = vld [vmem:[#allocation4 + $0x370] sm:$0xff]
    %v266 = vld [vmem:[#allocation4 + $0x378] sm:$0xff]
    %v267 = vld [vmem:[#allocation4 + $0x380] sm:$0xff]
    %v268 = vld [vmem:[#allocation4 + $0x388] sm:$0xff]
    %v269 = vld [vmem:[#allocation4 + $0x390] sm:$0xff]
    %v270 = vld [vmem:[#allocation4 + $0x398] sm:$0xff]
    %v271 = vld [vmem:[#allocation4 + $0x3a0] sm:$0xff]
    %v272 = vld [vmem:[#allocation4 + $0x3a8] sm:$0xff]
    %v273 = vld [vmem:[#allocation4 + $0x3b0] sm:$0xff]
    %v274 = vld [vmem:[#allocation4 + $0x3b8] sm:$0xff]
    %v275 = vld [vmem:[#allocation4 + $0x3c0] sm:$0xff]
    %v276 = vld [vmem:[#allocation4 + $0x3c8] sm:$0xff]
    %v277 = vld [vmem:[#allocation4 + $0x3d0] sm:$0xff]
    %v278 = vld [vmem:[#allocation4 + $0x3d8] sm:$0xff]
    %v279 = vld [vmem:[#allocation4 + $0x3e0] sm:$0xff]
    %v280 = vld [vmem:[#allocation4 + $0x3e8] sm:$0xff]
    %v281 = vld [vmem:[#allocation4 + $0x3f0] sm:$0xff]
    %v282 = vld [vmem:[#allocation4 + $0x3f8] sm:$0xff]
    %v283 = vld [vmem:[#allocation4 + $0x400] sm:$0xff]
    %v284 = vld [vmem:[#allocation4 + $0x408] sm:$0xff]
    %v285 = vld [vmem:[#allocation4 + $0x410] sm:$0xff]
    %v286 = vld [vmem:[#allocation4 + $0x418] sm:$0xff]
    %v287 = vld [vmem:[#allocation4 + $0x420] sm:$0xff]
    %v288 = vld [vmem:[#allocation4 + $0x428] sm:$0xff]
    %v289 = vld [vmem:[#allocation4 + $0x430] sm:$0xff]
    %v290 = vld [vmem:[#allocation4 + $0x438] sm:$0xff]
    %v291 = vld [vmem:[#allocation4 + $0x440] sm:$0xff]
    %v292 = vld [vmem:[#allocation4 + $0x448] sm:$0xff]
    %v293 = vld [vmem:[#allocation4 + $0x450] sm:$0xff]
    %v294 = vld [vmem:[#allocation4 + $0x458] sm:$0xff]
    %v295 = vld [vmem:[#allocation4 + $0x460] sm:$0xff]
    %v296 = vld [vmem:[#allocation4 + $0x468] sm:$0xff]
    %v297 = vld [vmem:[#allocation4 + $0x470] sm:$0xff]
    %v298 = vld [vmem:[#allocation4 + $0x478] sm:$0xff]
    %v299 = vld [vmem:[#allocation4 + $0x480] sm:$0xff]
    %v300 = vld [vmem:[#allocation4 + $0x488] sm:$0xff]
    %v301 = vld [vmem:[#allocation4 + $0x490] sm:$0xff]
    %v302 = vld [vmem:[#allocation4 + $0x498] sm:$0xff]
    %v303 = vld [vmem:[#allocation4 + $0x4a0] sm:$0xff]
    %v304 = vld [vmem:[#allocation4 + $0x4a8] sm:$0xff]
    %v305 = vld [vmem:[#allocation4 + $0x4b0] sm:$0xff]
    %v306 = vld [vmem:[#allocation4 + $0x4b8] sm:$0xff]
    %v307 = vld [vmem:[#allocation4 + $0x4c0] sm:$0xff]
    %v308 = vld [vmem:[#allocation4 + $0x4c8] sm:$0xff]
    %v309 = vld [vmem:[#allocation4 + $0x4d0] sm:$0xff]
    %v310 = vld [vmem:[#allocation4 + $0x4d8] sm:$0xff]
    %v311 = vld [vmem:[#allocation4 + $0x4e0] sm:$0xff]
    %v312 = vld [vmem:[#allocation4 + $0x4e8] sm:$0xff]
    %v313 = vld [vmem:[#allocation4 + $0x4f0] sm:$0xff]
    %v314 = vld [vmem:[#allocation4 + $0x4f8] sm:$0xff]
    %v315 = vld [vmem:[#allocation4 + $0x500] sm:$0xff]
    %v316 = vld [vmem:[#allocation4 + $0x508] sm:$0xff]
    %v317 = vld [vmem:[#allocation4 + $0x510] sm:$0xff]
    %v318 = vld [vmem:[#allocation4 + $0x518] sm:$0xff]
    %v319 = vld [vmem:[#allocation4 + $0x520] sm:$0xff]
    %v320 = vld [vmem:[#allocation4 + $0x528] sm:$0xff]
    %v321 = vld [vmem:[#allocation4 + $0x530] sm:$0xff]
    %v322 = vld [vmem:[#allocation4 + $0x538] sm:$0xff]
    %v323 = vld [vmem:[#allocation4 + $0x540] sm:$0xff]
    %v324 = vld [vmem:[#allocation4 + $0x548] sm:$0xff]
    %v325 = vld [vmem:[#allocation4 + $0x550] sm:$0xff]
    %v326 = vld [vmem:[#allocation4 + $0x558] sm:$0xff]
    %v327 = vld [vmem:[#allocation4 + $0x560] sm:$0xff]
    %v328 = vld [vmem:[#allocation4 + $0x568] sm:$0xff]
    %v329 = vld [vmem:[#allocation4 + $0x570] sm:$0xff]
    %v330 = vld [vmem:[#allocation4 + $0x578] sm:$0xff]
    %v331 = vld [vmem:[#allocation4 + $0x580] sm:$0xff]
    %v332 = vld [vmem:[#allocation4 + $0x588] sm:$0xff]
    %v333 = vld [vmem:[#allocation4 + $0x590] sm:$0xff]
    %v334 = vld [vmem:[#allocation4 + $0x598] sm:$0xff]
    %v335 = vld [vmem:[#allocation4 + $0x5a0] sm:$0xff]
    %v336 = vld [vmem:[#allocation4 + $0x5a8] sm:$0xff]
    %v337 = vld [vmem:[#allocation4 + $0x5b0] sm:$0xff]
    %v338 = vld [vmem:[#allocation4 + $0x5b8] sm:$0xff]
    %v339 = vld [vmem:[#allocation4 + $0x5c0] sm:$0xff]
    %v340 = vld [vmem:[#allocation4 + $0x5c8] sm:$0xff]
    %v341 = vld [vmem:[#allocation4 + $0x5d0] sm:$0xff]
    %v342 = vld [vmem:[#allocation4 + $0x5d8] sm:$0xff]
    %v343 = vld [vmem:[#allocation4 + $0x5e0] sm:$0xff]
    %v344 = vld [vmem:[#allocation4 + $0x5e8] sm:$0xff]
    %v345 = vld [vmem:[#allocation4 + $0x5f0] sm:$0xff]
    %v346 = vld [vmem:[#allocation4 + $0x5f8] sm:$0xff]
    %v347 = vld [vmem:[#allocation4 + $0x600] sm:$0xff]
    %v348 = vld [vmem:[#allocation4 + $0x608] sm:$0xff]
    %v349 = vld [vmem:[#allocation4 + $0x610] sm:$0xff]
    %v350 = vld [vmem:[#allocation4 + $0x618] sm:$0xff]
    %v351 = vld [vmem:[#allocation6] sm:$0xf]
    %v353 = vlaneseq
    %v354 = vshrl.u32 %v353, 7
    %v355 = vsub.s32 0, %v354
    %v356 = vrot.slane %v351, %v355
    %v357 = vlaneseq
    %v358 = vshrl.u32 %v357, 7
    %v359 = vsub.s32 1, %v358
    %v360 = vrot.slane %v351, %v359
    %v361 = vlaneseq
    %v362 = vshrl.u32 %v361, 7
    %v363 = vsub.s32 2, %v362
    %v364 = vrot.slane %v351, %v363
    %v365 = vlaneseq
    %v366 = vshrl.u32 %v365, 7
    %v367 = vsub.s32 3, %v366
    %v368 = vrot.slane %v351, %v367
    %v569 = vunpack.c.l.b16 %v155
    %v570 = vunpack.c.h.b16 %v155
    %v571 = vunpack.c.l.b16 %v156
    %v572 = vunpack.c.h.b16 %v156
    %v573 = vunpack.c.l.b16 %v157
    %v574 = vunpack.c.h.b16 %v157
    %v575 = vunpack.c.l.b16 %v158
    %v576 = vunpack.c.h.b16 %v158
    %v577 = vunpack.c.l.b16 %v159
    %v578 = vunpack.c.h.b16 %v159
    %v579 = vunpack.c.l.b16 %v160
    %v580 = vunpack.c.h.b16 %v160
    %v581 = vunpack.c.l.b16 %v161
    %v582 = vunpack.c.h.b16 %v161
    %v583 = vunpack.c.l.b16 %v162
    %v584 = vunpack.c.h.b16 %v162
    %v585 = vunpack.c.l.b16 %v163
    %v586 = vunpack.c.h.b16 %v163
    %v587 = vunpack.c.l.b16 %v164
    %v588 = vunpack.c.h.b16 %v164
    %v589 = vunpack.c.l.b16 %v165
    %v590 = vunpack.c.h.b16 %v165
    %v591 = vunpack.c.l.b16 %v166
    %v592 = vunpack.c.h.b16 %v166
    %v593 = vunpack.c.l.b16 %v167
    %v594 = vunpack.c.h.b16 %v167
    %v595 = vunpack.c.l.b16 %v168
    %v596 = vunpack.c.h.b16 %v168
    %v597 = vunpack.c.l.b16 %v169
    %v598 = vunpack.c.h.b16 %v169
    %v599 = vunpack.c.l.b16 %v170
    %v600 = vunpack.c.h.b16 %v170
    %v601 = vunpack.c.l.b16 %v171
    %v602 = vunpack.c.h.b16 %v171
    %v603 = vunpack.c.l.b16 %v172
    %v604 = vunpack.c.h.b16 %v172
    %v605 = vunpack.c.l.b16 %v173
    %v606 = vunpack.c.h.b16 %v173
    %v607 = vunpack.c.l.b16 %v174
    %v608 = vunpack.c.h.b16 %v174
    %v609 = vunpack.c.l.b16 %v175
    %v610 = vunpack.c.h.b16 %v175
    %v611 = vunpack.c.l.b16 %v176
    %v612 = vunpack.c.h.b16 %v176
    %v613 = vunpack.c.l.b16 %v177
    %v614 = vunpack.c.h.b16 %v177
    %v615 = vunpack.c.l.b16 %v178
    %v616 = vunpack.c.h.b16 %v178
    %v617 = vunpack.c.l.b16 %v179
    %v618 = vunpack.c.h.b16 %v179
    %v619 = vunpack.c.l.b16 %v180
    %v620 = vunpack.c.h.b16 %v180
    %v621 = vunpack.c.l.b16 %v181
    %v622 = vunpack.c.h.b16 %v181
    %v623 = vunpack.c.l.b16 %v182
    %v624 = vunpack.c.h.b16 %v182
    %v625 = vunpack.c.l.b16 %v183
    %v626 = vunpack.c.h.b16 %v183
    %v627 = vunpack.c.l.b16 %v184
    %v628 = vunpack.c.h.b16 %v184
    %v629 = vunpack.c.l.b16 %v185
    %v630 = vunpack.c.h.b16 %v185
    %v631 = vunpack.c.l.b16 %v186
    %v632 = vunpack.c.h.b16 %v186
    %v633 = vunpack.c.l.b16 %v187
    %v634 = vunpack.c.h.b16 %v187
    %v635 = vunpack.c.l.b16 %v188
    %v636 = vunpack.c.h.b16 %v188
    %v637 = vunpack.c.l.b16 %v189
    %v638 = vunpack.c.h.b16 %v189
    %v639 = vunpack.c.l.b16 %v190
    %v640 = vunpack.c.h.b16 %v190
    %v641 = vunpack.c.l.b16 %v191
    %v642 = vunpack.c.h.b16 %v191
    %v643 = vunpack.c.l.b16 %v192
    %v644 = vunpack.c.h.b16 %v192
    %v645 = vunpack.c.l.b16 %v193
    %v646 = vunpack.c.h.b16 %v193
    %v647 = vunpack.c.l.b16 %v194
    %v648 = vunpack.c.h.b16 %v194
    %v649 = vunpack.c.l.b16 %v195
    %v650 = vunpack.c.h.b16 %v195
    %v651 = vunpack.c.l.b16 %v196
    %v652 = vunpack.c.h.b16 %v196
    %v653 = vunpack.c.l.b16 %v197
    %v654 = vunpack.c.h.b16 %v197
    %v655 = vunpack.c.l.b16 %v198
    %v656 = vunpack.c.h.b16 %v198
    %v657 = vunpack.c.l.b16 %v199
    %v658 = vunpack.c.h.b16 %v199
    %v659 = vunpack.c.l.b16 %v200
    %v660 = vunpack.c.h.b16 %v200
    %v661 = vunpack.c.l.b16 %v201
    %v662 = vunpack.c.h.b16 %v201
    %v663 = vunpack.c.l.b16 %v202
    %v664 = vunpack.c.h.b16 %v202
    %v665 = vunpack.c.l.b16 %v203
    %v666 = vunpack.c.h.b16 %v203
    %v667 = vunpack.c.l.b16 %v204
    %v668 = vunpack.c.h.b16 %v204
    %v669 = vunpack.c.l.b16 %v205
    %v670 = vunpack.c.h.b16 %v205
    %v671 = vunpack.c.l.b16 %v206
    %v672 = vunpack.c.h.b16 %v206
    %v673 = vunpack.c.l.b16 %v207
    %v674 = vunpack.c.h.b16 %v207
    %v675 = vunpack.c.l.b16 %v208
    %v676 = vunpack.c.h.b16 %v208
    %v677 = vunpack.c.l.b16 %v209
    %v678 = vunpack.c.h.b16 %v209
    %v679 = vunpack.c.l.b16 %v210
    %v680 = vunpack.c.h.b16 %v210
    %v681 = vunpack.c.l.b16 %v211
    %v682 = vunpack.c.h.b16 %v211
    %v683 = vunpack.c.l.b16 %v212
    %v684 = vunpack.c.h.b16 %v212
    %v685 = vunpack.c.l.b16 %v213
    %v686 = vunpack.c.h.b16 %v213
    %v687 = vunpack.c.l.b16 %v214
    %v688 = vunpack.c.h.b16 %v214
    %v689 = vunpack.c.l.b16 %v215
    %v690 = vunpack.c.h.b16 %v215
    %v691 = vunpack.c.l.b16 %v216
    %v692 = vunpack.c.h.b16 %v216
    %v693 = vunpack.c.l.b16 %v217
    %v694 = vunpack.c.h.b16 %v217
    %v695 = vunpack.c.l.b16 %v218
    %v696 = vunpack.c.h.b16 %v218
    %v697 = vunpack.c.l.b16 %v219
    %v698 = vunpack.c.h.b16 %v219
    %v699 = vunpack.c.l.b16 %v220
    %v700 = vunpack.c.h.b16 %v220
    %v701 = vunpack.c.l.b16 %v221
    %v702 = vunpack.c.h.b16 %v221
    %v703 = vunpack.c.l.b16 %v222
    %v704 = vunpack.c.h.b16 %v222
    %v705 = vunpack.c.l.b16 %v223
    %v706 = vunpack.c.h.b16 %v223
    %v707 = vunpack.c.l.b16 %v224
    %v708 = vunpack.c.h.b16 %v224
    %v709 = vunpack.c.l.b16 %v225
    %v710 = vunpack.c.h.b16 %v225
    %v711 = vunpack.c.l.b16 %v226
    %v712 = vunpack.c.h.b16 %v226
    %v713 = vunpack.c.l.b16 %v227
    %v714 = vunpack.c.h.b16 %v227
    %v715 = vunpack.c.l.b16 %v228
    %v716 = vunpack.c.h.b16 %v228
    %v717 = vunpack.c.l.b16 %v229
    %v718 = vunpack.c.h.b16 %v229
    %v719 = vunpack.c.l.b16 %v230
    %v720 = vunpack.c.h.b16 %v230
    %v721 = vunpack.c.l.b16 %v231
    %v722 = vunpack.c.h.b16 %v231
    %v723 = vunpack.c.l.b16 %v232
    %v724 = vunpack.c.h.b16 %v232
    %v725 = vunpack.c.l.b16 %v233
    %v726 = vunpack.c.h.b16 %v233
    %v727 = vunpack.c.l.b16 %v234
    %v728 = vunpack.c.h.b16 %v234
    %v729 = vunpack.c.l.b16 %v235
    %v730 = vunpack.c.h.b16 %v235
    %v731 = vunpack.c.l.b16 %v236
    %v732 = vunpack.c.h.b16 %v236
    %v733 = vunpack.c.l.b16 %v237
    %v734 = vunpack.c.h.b16 %v237
    %v735 = vunpack.c.l.b16 %v238
    %v736 = vunpack.c.h.b16 %v238
    %v737 = vunpack.c.l.b16 %v239
    %v738 = vunpack.c.h.b16 %v239
    %v739 = vunpack.c.l.b16 %v240
    %v740 = vunpack.c.h.b16 %v240
    %v741 = vunpack.c.l.b16 %v241
    %v742 = vunpack.c.h.b16 %v241
    %v743 = vunpack.c.l.b16 %v242
    %v744 = vunpack.c.h.b16 %v242
    %v745 = vunpack.c.l.b16 %v243
    %v746 = vunpack.c.h.b16 %v243
    %v747 = vunpack.c.l.b16 %v244
    %v748 = vunpack.c.h.b16 %v244
    %v749 = vunpack.c.l.b16 %v245
    %v750 = vunpack.c.h.b16 %v245
    %v751 = vunpack.c.l.b16 %v246
    %v752 = vunpack.c.h.b16 %v246
    %v753 = vunpack.c.l.b16 %v247
    %v754 = vunpack.c.h.b16 %v247
    %v755 = vunpack.c.l.b16 %v248
    %v756 = vunpack.c.h.b16 %v248
    %v757 = vunpack.c.l.b16 %v249
    %v758 = vunpack.c.h.b16 %v249
    %v759 = vunpack.c.l.b16 %v250
    %v760 = vunpack.c.h.b16 %v250
    %v761 = vunpack.c.l.b16 %v251
    %v762 = vunpack.c.h.b16 %v251
    %v763 = vunpack.c.l.b16 %v252
    %v764 = vunpack.c.h.b16 %v252
    %v765 = vunpack.c.l.b16 %v253
    %v766 = vunpack.c.h.b16 %v253
    %v767 = vunpack.c.l.b16 %v254
    %v768 = vunpack.c.h.b16 %v254
    %v769 = vunpack.c.l.b16 %v255
    %v770 = vunpack.c.h.b16 %v255
    %v771 = vunpack.c.l.b16 %v256
    %v772 = vunpack.c.h.b16 %v256
    %v773 = vunpack.c.l.b16 %v257
    %v774 = vunpack.c.h.b16 %v257
    %v775 = vunpack.c.l.b16 %v258
    %v776 = vunpack.c.h.b16 %v258
    %v777 = vunpack.c.l.b16 %v259
    %v778 = vunpack.c.h.b16 %v259
    %v779 = vunpack.c.l.b16 %v260
    %v780 = vunpack.c.h.b16 %v260
    %v781 = vunpack.c.l.b16 %v261
    %v782 = vunpack.c.h.b16 %v261
    %v783 = vunpack.c.l.b16 %v262
    %v784 = vunpack.c.h.b16 %v262
    %v785 = vunpack.c.l.b16 %v263
    %v786 = vunpack.c.h.b16 %v263
    %v787 = vunpack.c.l.b16 %v264
    %v788 = vunpack.c.h.b16 %v264
    %v789 = vunpack.c.l.b16 %v265
    %v790 = vunpack.c.h.b16 %v265
    %v791 = vunpack.c.l.b16 %v266
    %v792 = vunpack.c.h.b16 %v266
    %v793 = vunpack.c.l.b16 %v267
    %v794 = vunpack.c.h.b16 %v267
    %v795 = vunpack.c.l.b16 %v268
    %v796 = vunpack.c.h.b16 %v268
    %v797 = vunpack.c.l.b16 %v269
    %v798 = vunpack.c.h.b16 %v269
    %v799 = vunpack.c.l.b16 %v270
    %v800 = vunpack.c.h.b16 %v270
    %v801 = vunpack.c.l.b16 %v271
    %v802 = vunpack.c.h.b16 %v271
    %v803 = vunpack.c.l.b16 %v272
    %v804 = vunpack.c.h.b16 %v272
    %v805 = vunpack.c.l.b16 %v273
    %v806 = vunpack.c.h.b16 %v273
    %v807 = vunpack.c.l.b16 %v274
    %v808 = vunpack.c.h.b16 %v274
    %v809 = vunpack.c.l.b16 %v275
    %v810 = vunpack.c.h.b16 %v275
    %v811 = vunpack.c.l.b16 %v276
    %v812 = vunpack.c.h.b16 %v276
    %v813 = vunpack.c.l.b16 %v277
    %v814 = vunpack.c.h.b16 %v277
    %v815 = vunpack.c.l.b16 %v278
    %v816 = vunpack.c.h.b16 %v278
    %v817 = vunpack.c.l.b16 %v279
    %v818 = vunpack.c.h.b16 %v279
    %v819 = vunpack.c.l.b16 %v280
    %v820 = vunpack.c.h.b16 %v280
    %v821 = vunpack.c.l.b16 %v281
    %v822 = vunpack.c.h.b16 %v281
    %v823 = vunpack.c.l.b16 %v282
    %v824 = vunpack.c.h.b16 %v282
    %v825 = vunpack.c.l.b16 %v283
    %v826 = vunpack.c.h.b16 %v283
    %v827 = vunpack.c.l.b16 %v284
    %v828 = vunpack.c.h.b16 %v284
    %v829 = vunpack.c.l.b16 %v285
    %v830 = vunpack.c.h.b16 %v285
    %v831 = vunpack.c.l.b16 %v286
    %v832 = vunpack.c.h.b16 %v286
    %v833 = vunpack.c.l.b16 %v287
    %v834 = vunpack.c.h.b16 %v287
    %v835 = vunpack.c.l.b16 %v288
    %v836 = vunpack.c.h.b16 %v288
    %v837 = vunpack.c.l.b16 %v289
    %v838 = vunpack.c.h.b16 %v289
    %v839 = vunpack.c.l.b16 %v290
    %v840 = vunpack.c.h.b16 %v290
    %v841 = vunpack.c.l.b16 %v291
    %v842 = vunpack.c.h.b16 %v291
    %v843 = vunpack.c.l.b16 %v292
    %v844 = vunpack.c.h.b16 %v292
    %v845 = vunpack.c.l.b16 %v293
    %v846 = vunpack.c.h.b16 %v293
    %v847 = vunpack.c.l.b16 %v294
    %v848 = vunpack.c.h.b16 %v294
    %v849 = vunpack.c.l.b16 %v295
    %v850 = vunpack.c.h.b16 %v295
    %v851 = vunpack.c.l.b16 %v296
    %v852 = vunpack.c.h.b16 %v296
    %v853 = vunpack.c.l.b16 %v297
    %v854 = vunpack.c.h.b16 %v297
    %v855 = vunpack.c.l.b16 %v298
    %v856 = vunpack.c.h.b16 %v298
    %v857 = vunpack.c.l.b16 %v299
    %v858 = vunpack.c.h.b16 %v299
    %v859 = vunpack.c.l.b16 %v300
    %v860 = vunpack.c.h.b16 %v300
    %v861 = vunpack.c.l.b16 %v301
    %v862 = vunpack.c.h.b16 %v301
    %v863 = vunpack.c.l.b16 %v302
    %v864 = vunpack.c.h.b16 %v302
    %v865 = vunpack.c.l.b16 %v303
    %v866 = vunpack.c.h.b16 %v303
    %v867 = vunpack.c.l.b16 %v304
    %v868 = vunpack.c.h.b16 %v304
    %v869 = vunpack.c.l.b16 %v305
    %v870 = vunpack.c.h.b16 %v305
    %v871 = vunpack.c.l.b16 %v306
    %v872 = vunpack.c.h.b16 %v306
    %v873 = vunpack.c.l.b16 %v307
    %v874 = vunpack.c.h.b16 %v307
    %v875 = vunpack.c.l.b16 %v308
    %v876 = vunpack.c.h.b16 %v308
    %v877 = vunpack.c.l.b16 %v309
    %v878 = vunpack.c.h.b16 %v309
    %v879 = vunpack.c.l.b16 %v310
    %v880 = vunpack.c.h.b16 %v310
    %v881 = vunpack.c.l.b16 %v311
    %v882 = vunpack.c.h.b16 %v311
    %v883 = vunpack.c.l.b16 %v312
    %v884 = vunpack.c.h.b16 %v312
    %v885 = vunpack.c.l.b16 %v313
    %v886 = vunpack.c.h.b16 %v313
    %v887 = vunpack.c.l.b16 %v314
    %v888 = vunpack.c.h.b16 %v314
    %v889 = vunpack.c.l.b16 %v315
    %v890 = vunpack.c.h.b16 %v315
    %v891 = vunpack.c.l.b16 %v316
    %v892 = vunpack.c.h.b16 %v316
    %v893 = vunpack.c.l.b16 %v317
    %v894 = vunpack.c.h.b16 %v317
    %v895 = vunpack.c.l.b16 %v318
    %v896 = vunpack.c.h.b16 %v318
    %v897 = vunpack.c.l.b16 %v319
    %v898 = vunpack.c.h.b16 %v319
    %v899 = vunpack.c.l.b16 %v320
    %v900 = vunpack.c.h.b16 %v320
    %v901 = vunpack.c.l.b16 %v321
    %v902 = vunpack.c.h.b16 %v321
    %v903 = vunpack.c.l.b16 %v322
    %v904 = vunpack.c.h.b16 %v322
    %v905 = vunpack.c.l.b16 %v323
    %v906 = vunpack.c.h.b16 %v323
    %v907 = vunpack.c.l.b16 %v324
    %v908 = vunpack.c.h.b16 %v324
    %v909 = vunpack.c.l.b16 %v325
    %v910 = vunpack.c.h.b16 %v325
    %v911 = vunpack.c.l.b16 %v326
    %v912 = vunpack.c.h.b16 %v326
    %v913 = vunpack.c.l.b16 %v327
    %v914 = vunpack.c.h.b16 %v327
    %v915 = vunpack.c.l.b16 %v328
    %v916 = vunpack.c.h.b16 %v328
    %v917 = vunpack.c.l.b16 %v329
    %v918 = vunpack.c.h.b16 %v329
    %v919 = vunpack.c.l.b16 %v330
    %v920 = vunpack.c.h.b16 %v330
    %v921 = vunpack.c.l.b16 %v331
    %v922 = vunpack.c.h.b16 %v331
    %v923 = vunpack.c.l.b16 %v332
    %v924 = vunpack.c.h.b16 %v332
    %v925 = vunpack.c.l.b16 %v333
    %v926 = vunpack.c.h.b16 %v333
    %v927 = vunpack.c.l.b16 %v334
    %v928 = vunpack.c.h.b16 %v334
    %v929 = vunpack.c.l.b16 %v335
    %v930 = vunpack.c.h.b16 %v335
    %v931 = vunpack.c.l.b16 %v336
    %v932 = vunpack.c.h.b16 %v336
    %v933 = vunpack.c.l.b16 %v337
    %v934 = vunpack.c.h.b16 %v337
    %v935 = vunpack.c.l.b16 %v338
    %v936 = vunpack.c.h.b16 %v338
    %v937 = vunpack.c.l.b16 %v339
    %v938 = vunpack.c.h.b16 %v339
    %v939 = vunpack.c.l.b16 %v340
    %v940 = vunpack.c.h.b16 %v340
    %v941 = vunpack.c.l.b16 %v341
    %v942 = vunpack.c.h.b16 %v341
    %v943 = vunpack.c.l.b16 %v342
    %v944 = vunpack.c.h.b16 %v342
    %v945 = vunpack.c.l.b16 %v343
    %v946 = vunpack.c.h.b16 %v343
    %v947 = vunpack.c.l.b16 %v344
    %v948 = vunpack.c.h.b16 %v344
    %v949 = vunpack.c.l.b16 %v345
    %v950 = vunpack.c.h.b16 %v345
    %v951 = vunpack.c.l.b16 %v346
    %v952 = vunpack.c.h.b16 %v346
    %v953 = vunpack.c.l.b16 %v347
    %v954 = vunpack.c.h.b16 %v347
    %v955 = vunpack.c.l.b16 %v348
    %v956 = vunpack.c.h.b16 %v348
    %v957 = vunpack.c.l.b16 %v349
    %v958 = vunpack.c.h.b16 %v349
    %v959 = vunpack.c.l.b16 %v350
    %v960 = vunpack.c.h.b16 %v350
    %v961 = vpack.c.b16 %v573, %v569
    %v962 = vpack.c.b16 %v574, %v570
    %v963 = vpack.c.b16 %v575, %v571
    %v964 = vpack.c.b16 %v576, %v572
    %v965 = vpack.c.b16 %v581, %v577
    %v966 = vpack.c.b16 %v582, %v578
    %v967 = vpack.c.b16 %v583, %v579
    %v968 = vpack.c.b16 %v584, %v580
    %v969 = vpack.c.b16 %v589, %v585
    %v970 = vpack.c.b16 %v590, %v586
    %v971 = vpack.c.b16 %v591, %v587
    %v972 = vpack.c.b16 %v592, %v588
    %v973 = vpack.c.b16 %v597, %v593
    %v974 = vpack.c.b16 %v598, %v594
    %v975 = vpack.c.b16 %v599, %v595
    %v976 = vpack.c.b16 %v600, %v596
    %v977 = vpack.c.b16 %v605, %v601
    %v978 = vpack.c.b16 %v606, %v602
    %v979 = vpack.c.b16 %v607, %v603
    %v980 = vpack.c.b16 %v608, %v604
    %v981 = vpack.c.b16 %v613, %v609
    %v982 = vpack.c.b16 %v614, %v610
    %v983 = vpack.c.b16 %v615, %v611
    %v984 = vpack.c.b16 %v616, %v612
    %v985 = vpack.c.b16 %v621, %v617
    %v986 = vpack.c.b16 %v622, %v618
    %v987 = vpack.c.b16 %v623, %v619
    %v988 = vpack.c.b16 %v624, %v620
    %v989 = vpack.c.b16 %v629, %v625
    %v990 = vpack.c.b16 %v630, %v626
    %v991 = vpack.c.b16 %v631, %v627
    %v992 = vpack.c.b16 %v632, %v628
    %v993 = vpack.c.b16 %v637, %v633
    %v994 = vpack.c.b16 %v638, %v634
    %v995 = vpack.c.b16 %v639, %v635
    %v996 = vpack.c.b16 %v640, %v636
    %v997 = vpack.c.b16 %v645, %v641
    %v998 = vpack.c.b16 %v646, %v642
    %v999 = vpack.c.b16 %v647, %v643
    %v1000 = vpack.c.b16 %v648, %v644
    %v1001 = vpack.c.b16 %v653, %v649
    %v1002 = vpack.c.b16 %v654, %v650
    %v1003 = vpack.c.b16 %v655, %v651
    %v1004 = vpack.c.b16 %v656, %v652
    %v1005 = vpack.c.b16 %v661, %v657
    %v1006 = vpack.c.b16 %v662, %v658
    %v1007 = vpack.c.b16 %v663, %v659
    %v1008 = vpack.c.b16 %v664, %v660
    %v1009 = vpack.c.b16 %v669, %v665
    %v1010 = vpack.c.b16 %v670, %v666
    %v1011 = vpack.c.b16 %v671, %v667
    %v1012 = vpack.c.b16 %v672, %v668
    %v1013 = vpack.c.b16 %v677, %v673
    %v1014 = vpack.c.b16 %v678, %v674
    %v1015 = vpack.c.b16 %v679, %v675
    %v1016 = vpack.c.b16 %v680, %v676
    %v1017 = vpack.c.b16 %v685, %v681
    %v1018 = vpack.c.b16 %v686, %v682
    %v1019 = vpack.c.b16 %v687, %v683
    %v1020 = vpack.c.b16 %v688, %v684
    %v1021 = vpack.c.b16 %v693, %v689
    %v1022 = vpack.c.b16 %v694, %v690
    %v1023 = vpack.c.b16 %v695, %v691
    %v1024 = vpack.c.b16 %v696, %v692
    %v1025 = vpack.c.b16 %v701, %v697
    %v1026 = vpack.c.b16 %v702, %v698
    %v1027 = vpack.c.b16 %v703, %v699
    %v1028 = vpack.c.b16 %v704, %v700
    %v1029 = vpack.c.b16 %v709, %v705
    %v1030 = vpack.c.b16 %v710, %v706
    %v1031 = vpack.c.b16 %v711, %v707
    %v1032 = vpack.c.b16 %v712, %v708
    %v1033 = vpack.c.b16 %v717, %v713
    %v1034 = vpack.c.b16 %v718, %v714
    %v1035 = vpack.c.b16 %v719, %v715
    %v1036 = vpack.c.b16 %v720, %v716
    %v1037 = vpack.c.b16 %v725, %v721
    %v1038 = vpack.c.b16 %v726, %v722
    %v1039 = vpack.c.b16 %v727, %v723
    %v1040 = vpack.c.b16 %v728, %v724
    %v1041 = vpack.c.b16 %v733, %v729
    %v1042 = vpack.c.b16 %v734, %v730
    %v1043 = vpack.c.b16 %v735, %v731
    %v1044 = vpack.c.b16 %v736, %v732
    %v1045 = vpack.c.b16 %v741, %v737
    %v1046 = vpack.c.b16 %v742, %v738
    %v1047 = vpack.c.b16 %v743, %v739
    %v1048 = vpack.c.b16 %v744, %v740
    %v1049 = vpack.c.b16 %v749, %v745
    %v1050 = vpack.c.b16 %v750, %v746
    %v1051 = vpack.c.b16 %v751, %v747
    %v1052 = vpack.c.b16 %v752, %v748
    %v1053 = vpack.c.b16 %v757, %v753
    %v1054 = vpack.c.b16 %v758, %v754
    %v1055 = vpack.c.b16 %v759, %v755
    %v1056 = vpack.c.b16 %v760, %v756
    %v1057 = vpack.c.b16 %v765, %v761
    %v1058 = vpack.c.b16 %v766, %v762
    %v1059 = vpack.c.b16 %v767, %v763
    %v1060 = vpack.c.b16 %v768, %v764
    %v1061 = vpack.c.b16 %v773, %v769
    %v1062 = vpack.c.b16 %v774, %v770
    %v1063 = vpack.c.b16 %v775, %v771
    %v1064 = vpack.c.b16 %v776, %v772
    %v1065 = vpack.c.b16 %v781, %v777
    %v1066 = vpack.c.b16 %v782, %v778
    %v1067 = vpack.c.b16 %v783, %v779
    %v1068 = vpack.c.b16 %v784, %v780
    %v1069 = vpack.c.b16 %v789, %v785
    %v1070 = vpack.c.b16 %v790, %v786
    %v1071 = vpack.c.b16 %v791, %v787
    %v1072 = vpack.c.b16 %v792, %v788
    %v1073 = vpack.c.b16 %v797, %v793
    %v1074 = vpack.c.b16 %v798, %v794
    %v1075 = vpack.c.b16 %v799, %v795
    %v1076 = vpack.c.b16 %v800, %v796
    %v1077 = vpack.c.b16 %v805, %v801
    %v1078 = vpack.c.b16 %v806, %v802
    %v1079 = vpack.c.b16 %v807, %v803
    %v1080 = vpack.c.b16 %v808, %v804
    %v1081 = vpack.c.b16 %v813, %v809
    %v1082 = vpack.c.b16 %v814, %v810
    %v1083 = vpack.c.b16 %v815, %v811
    %v1084 = vpack.c.b16 %v816, %v812
    %v1085 = vpack.c.b16 %v821, %v817
    %v1086 = vpack.c.b16 %v822, %v818
    %v1087 = vpack.c.b16 %v823, %v819
    %v1088 = vpack.c.b16 %v824, %v820
    %v1089 = vpack.c.b16 %v829, %v825
    %v1090 = vpack.c.b16 %v830, %v826
    %v1091 = vpack.c.b16 %v831, %v827
    %v1092 = vpack.c.b16 %v832, %v828
    %v1093 = vpack.c.b16 %v837, %v833
    %v1094 = vpack.c.b16 %v838, %v834
    %v1095 = vpack.c.b16 %v839, %v835
    %v1096 = vpack.c.b16 %v840, %v836
    %v1097 = vpack.c.b16 %v845, %v841
    %v1098 = vpack.c.b16 %v846, %v842
    %v1099 = vpack.c.b16 %v847, %v843
    %v1100 = vpack.c.b16 %v848, %v844
    %v1101 = vpack.c.b16 %v853, %v849
    %v1102 = vpack.c.b16 %v854, %v850
    %v1103 = vpack.c.b16 %v855, %v851
    %v1104 = vpack.c.b16 %v856, %v852
    %v1105 = vpack.c.b16 %v861, %v857
    %v1106 = vpack.c.b16 %v862, %v858
    %v1107 = vpack.c.b16 %v863, %v859
    %v1108 = vpack.c.b16 %v864, %v860
    %v1109 = vpack.c.b16 %v869, %v865
    %v1110 = vpack.c.b16 %v870, %v866
    %v1111 = vpack.c.b16 %v871, %v867
    %v1112 = vpack.c.b16 %v872, %v868
    %v1113 = vpack.c.b16 %v877, %v873
    %v1114 = vpack.c.b16 %v878, %v874
    %v1115 = vpack.c.b16 %v879, %v875
    %v1116 = vpack.c.b16 %v880, %v876
    %v1117 = vpack.c.b16 %v885, %v881
    %v1118 = vpack.c.b16 %v886, %v882
    %v1119 = vpack.c.b16 %v887, %v883
    %v1120 = vpack.c.b16 %v888, %v884
    %v1121 = vpack.c.b16 %v893, %v889
    %v1122 = vpack.c.b16 %v894, %v890
    %v1123 = vpack.c.b16 %v895, %v891
    %v1124 = vpack.c.b16 %v896, %v892
    %v1125 = vpack.c.b16 %v901, %v897
    %v1126 = vpack.c.b16 %v902, %v898
    %v1127 = vpack.c.b16 %v903, %v899
    %v1128 = vpack.c.b16 %v904, %v900
    %v1129 = vpack.c.b16 %v909, %v905
    %v1130 = vpack.c.b16 %v910, %v906
    %v1131 = vpack.c.b16 %v911, %v907
    %v1132 = vpack.c.b16 %v912, %v908
    %v1133 = vpack.c.b16 %v917, %v913
    %v1134 = vpack.c.b16 %v918, %v914
    %v1135 = vpack.c.b16 %v919, %v915
    %v1136 = vpack.c.b16 %v920, %v916
    %v1137 = vpack.c.b16 %v925, %v921
    %v1138 = vpack.c.b16 %v926, %v922
    %v1139 = vpack.c.b16 %v927, %v923
    %v1140 = vpack.c.b16 %v928, %v924
    %v1141 = vpack.c.b16 %v933, %v929
    %v1142 = vpack.c.b16 %v934, %v930
    %v1143 = vpack.c.b16 %v935, %v931
    %v1144 = vpack.c.b16 %v936, %v932
    %v1145 = vpack.c.b16 %v941, %v937
    %v1146 = vpack.c.b16 %v942, %v938
    %v1147 = vpack.c.b16 %v943, %v939
    %v1148 = vpack.c.b16 %v944, %v940
    %v1149 = vpack.c.b16 %v949, %v945
    %v1150 = vpack.c.b16 %v950, %v946
    %v1151 = vpack.c.b16 %v951, %v947
    %v1152 = vpack.c.b16 %v952, %v948
    %v1153 = vpack.c.b16 %v957, %v953
    %v1154 = vpack.c.b16 %v958, %v954
    %v1155 = vpack.c.b16 %v959, %v955
    %v1156 = vpack.c.b16 %v960, %v956
    %vm1353 = vcmask 130048
    %v1355 = vsel %vm1353, %v147, 0
    %v1358 = vsel %vm1353, %v154, 0
    %1360 = vmatprep.subr.bf16.mxu0 %v962
    %1361 = vmatpush1.bf16.msra.mxu0 %v961
    %1362 = vmatprep.subr.bf16.mxu0 %v966
    %1363 = vmatpush1.bf16.msra.mxu0 %v965
    %1364 = vmatprep.subr.bf16.mxu0 %v970
    %1365 = vmatpush1.bf16.msra.mxu0 %v969
    %1366 = vmatprep.subr.bf16.mxu0 %v974
    %1367 = vmatpush1.bf16.msra.mxu0 %v973
    %1368 = vmatprep.subr.bf16.mxu0 %v978
    %1369 = vmatpush1.bf16.msra.mxu0 %v977
    %1370 = vmatprep.subr.bf16.mxu0 %v982
    %1371 = vmatpush1.bf16.msra.mxu0 %v981
    %1372 = vmatprep.subr.bf16.mxu0 %v986
    %1373 = vmatpush1.bf16.msra.mxu0 %v985
    %1374 = vmatprep.subr.bf16.mxu0 %v990
    %1375 = vmatpush1.bf16.msra.mxu0 %v989
    %1376 = vmatprep.subr.bf16.mxu0 %v994
    %1377 = vmatpush1.bf16.msra.mxu0 %v993
    %1378 = vmatprep.subr.bf16.mxu0 %v998
    %1379 = vmatpush1.bf16.msra.mxu0 %v997
    %1380 = vmatprep.subr.bf16.mxu0 %v1002
    %1381 = vmatpush1.bf16.msra.mxu0 %v1001
    %1382 = vmatprep.subr.bf16.mxu0 %v1006
    %1383 = vmatpush1.bf16.msra.mxu0 %v1005
    %1384 = vmatprep.subr.bf16.mxu0 %v1010
    %1385 = vmatpush1.bf16.msra.mxu0 %v1009
    %1386 = vmatprep.subr.bf16.mxu0 %v1014
    %1387 = vmatpush1.bf16.msra.mxu0 %v1013
    %1388 = vmatprep.subr.bf16.mxu0 %v1018
    %1389 = vmatpush1.bf16.msra.mxu0 %v1017
    %1390 = vmatprep.subr.bf16.mxu0 %v1022
    %1391 = vmatpush1.bf16.msra.mxu0 %v1021
    %1392 = vmatprep.mubr.bf16.mxu0 %v142
    %1393 = vmatmul.mubr.bf16.gmra.mrb[0].mxu0 %v141
    %v1394 = vpop.f32.mrb[0].mxu0
    %v1395 = vadd.f32 %v356, %v1394
    %v1396 = vpop.f32.mrb[0].mxu0
    %v1397 = vadd.f32 %v360, %v1396
    %v1398 = vpop.f32.mrb[0].mxu0
    %v1399 = vadd.f32 %v356, %v1398
    %v1400 = vpop.f32.mrb[0].mxu0
    %v1401 = vadd.f32 %v360, %v1400
    %1402 = vmatprep.mubr.bf16.mxu0 %v149
    %1403 = vmatmul.mubr.bf16.gmra.mrb[0].mxu0 %v148
    %v1404 = vpop.f32.mrb[0].mxu0
    %v1405 = vadd.f32 %v356, %v1404
    %v1406 = vpop.f32.mrb[0].mxu0
    %v1407 = vadd.f32 %v360, %v1406
    %v1408 = vpop.f32.mrb[0].mxu0
    %v1409 = vadd.f32 %v356, %v1408
    %v1410 = vpop.f32.mrb[0].mxu0
    %v1411 = vadd.f32 %v360, %v1410
    %1412 = vdwg.mxu0
    %1413 = vmatprep.subr.bf16.mxu0 %v1026
    %1414 = vmatpush1.bf16.msra.mxu0 %v1025
    %1415 = vmatprep.subr.bf16.mxu0 %v1030
    %1416 = vmatpush1.bf16.msra.mxu0 %v1029
    %1417 = vmatprep.subr.bf16.mxu0 %v1034
    %1418 = vmatpush1.bf16.msra.mxu0 %v1033
    %1419 = vmatprep.subr.bf16.mxu0 %v1038
    %1420 = vmatpush1.bf16.msra.mxu0 %v1037
    %1421 = vmatprep.subr.bf16.mxu0 %v1042
    %1422 = vmatpush1.bf16.msra.mxu0 %v1041
    %1423 = vmatprep.subr.bf16.mxu0 %v1046
    %1424 = vmatpush1.bf16.msra.mxu0 %v1045
    %1425 = vmatprep.subr.bf16.mxu0 %v1050
    %1426 = vmatpush1.bf16.msra.mxu0 %v1049
    %1427 = vmatprep.subr.bf16.mxu0 %v1054
    %1428 = vmatpush1.bf16.msra.mxu0 %v1053
    %1429 = vmatprep.subr.bf16.mxu0 %v1058
    %1430 = vmatpush1.bf16.msra.mxu0 %v1057
    %1431 = vmatprep.subr.bf16.mxu0 %v1062
    %1432 = vmatpush1.bf16.msra.mxu0 %v1061
    %1433 = vmatprep.subr.bf16.mxu0 %v1066
    %1434 = vmatpush1.bf16.msra.mxu0 %v1065
    %1435 = vmatprep.subr.bf16.mxu0 %v1070
    %1436 = vmatpush1.bf16.msra.mxu0 %v1069
    %1437 = vmatprep.subr.bf16.mxu0 %v1074
    %1438 = vmatpush1.bf16.msra.mxu0 %v1073
    %1439 = vmatprep.subr.bf16.mxu0 %v1078
    %1440 = vmatpush1.bf16.msra.mxu0 %v1077
    %1441 = vmatprep.subr.bf16.mxu0 %v1082
    %1442 = vmatpush1.bf16.msra.mxu0 %v1081
    %1443 = vmatprep.subr.bf16.mxu0 %v1086
    %1444 = vmatpush1.bf16.msra.mxu0 %v1085
    %1445 = vmatprep.mubr.bf16.mxu0 %v144
    %1446 = vmatmul.mubr.bf16.gmra.mrb[0].mxu0 %v143
    %v1447 = vpop.f32.mrb[0].mxu0
    %v1448 = vadd.f32 %v1395, %v1447
    %v1449 = vpop.f32.mrb[0].mxu0
    %v1450 = vadd.f32 %v1397, %v1449
    %v1451 = vpop.f32.mrb[0].mxu0
    %v1452 = vadd.f32 %v1399, %v1451
    %v1453 = vpop.f32.mrb[0].mxu0
    %v1454 = vadd.f32 %v1401, %v1453
    %1455 = vmatprep.mubr.bf16.mxu0 %v151
    %1456 = vmatmul.mubr.bf16.gmra.mrb[0].mxu0 %v150
    %v1457 = vpop.f32.mrb[0].mxu0
    %v1458 = vadd.f32 %v1405, %v1457
    %v1459 = vpop.f32.mrb[0].mxu0
    %v1460 = vadd.f32 %v1407, %v1459
    %v1461 = vpop.f32.mrb[0].mxu0
    %v1462 = vadd.f32 %v1409, %v1461
    %v1463 = vpop.f32.mrb[0].mxu0
    %v1464 = vadd.f32 %v1411, %v1463
    %1465 = vdwg.mxu0
    %1466 = vmatprep.subr.bf16.mxu0 %v1090
    %1467 = vmatpush1.bf16.msra.mxu0 %v1089
    %1468 = vmatprep.subr.bf16.mxu0 %v1094
    %1469 = vmatpush1.bf16.msra.mxu0 %v1093
    %1470 = vmatprep.subr.bf16.mxu0 %v1098
    %1471 = vmatpush1.bf16.msra.mxu0 %v1097
    %1472 = vmatprep.subr.bf16.mxu0 %v1102
    %1473 = vmatpush1.bf16.msra.mxu0 %v1101
    %1474 = vmatprep.subr.bf16.mxu0 %v1106
    %1475 = vmatpush1.bf16.msra.mxu0 %v1105
    %1476 = vmatprep.subr.bf16.mxu0 %v1110
    %1477 = vmatpush1.bf16.msra.mxu0 %v1109
    %1478 = vmatprep.subr.bf16.mxu0 %v1114
    %1479 = vmatpush1.bf16.msra.mxu0 %v1113
    %1480 = vmatprep.subr.bf16.mxu0 %v1118
    %1481 = vmatpush1.bf16.msra.mxu0 %v1117
    %1482 = vmatprep.subr.bf16.mxu0 %v1122
    %1483 = vmatpush1.bf16.msra.mxu0 %v1121
    %1484 = vmatprep.subr.bf16.mxu0 %v1126
    %1485 = vmatpush1.bf16.msra.mxu0 %v1125
    %1486 = vmatprep.subr.bf16.mxu0 %v1130
    %1487 = vmatpush1.bf16.msra.mxu0 %v1129
    %1488 = vmatprep.subr.bf16.mxu0 %v1134
    %1489 = vmatpush1.bf16.msra.mxu0 %v1133
    %1490 = vmatprep.subr.bf16.mxu0 %v1138
    %1491 = vmatpush1.bf16.msra.mxu0 %v1137
    %1492 = vmatprep.subr.bf16.mxu0 %v1142
    %1493 = vmatpush1.bf16.msra.mxu0 %v1141
    %1494 = vmatprep.subr.bf16.mxu0 %v1146
    %1495 = vmatpush1.bf16.msra.mxu0 %v1145
    %1496 = vmatprep.subr.bf16.mxu0 %v1150
    %1497 = vmatpush1.bf16.msra.mxu0 %v1149
    %1498 = vmatprep.mubr.bf16.mxu0 %v146
    %1499 = vmatmul.mubr.bf16.gmra.mrb[0].mxu0 %v145
    %v1500 = vpop.f32.mrb[0].mxu0
    %v1501 = vadd.f32 %v1448, %v1500
    %v1502 = vpop.f32.mrb[0].mxu0
    %v1503 = vadd.f32 %v1450, %v1502
    %v1504 = vpop.f32.mrb[0].mxu0
    %v1505 = vadd.f32 %v1452, %v1504
    %v1506 = vpop.f32.mrb[0].mxu0
    %v1507 = vadd.f32 %v1454, %v1506
    %1508 = vmatprep.mubr.bf16.mxu0 %v153
    %1509 = vmatmul.mubr.bf16.gmra.mrb[0].mxu0 %v152
    %v1510 = vpop.f32.mrb[0].mxu0
    %v1511 = vadd.f32 %v1458, %v1510
    %v1512 = vpop.f32.mrb[0].mxu0
    %v1513 = vadd.f32 %v1460, %v1512
    %v1514 = vpop.f32.mrb[0].mxu0
    %v1515 = vadd.f32 %v1462, %v1514
    %v1516 = vpop.f32.mrb[0].mxu0
    %v1517 = vadd.f32 %v1464, %v1516
    %1518 = vdwg.mxu0
    %1519 = vmatprep.subr.bf16.mxu0 %v1154
    %1520 = vmatpush1.bf16.msra.mxu0 %v1153
    %1521 = vmatprep.subr.bf16.mxu0 0
    %1522 = vmatpush1.bf16.msra.mxu0 0
    %1523 = vmatprep.subr.bf16.mxu0 0
    %1524 = vmatpush1.bf16.msra.mxu0 0
    %1525 = vmatprep.subr.bf16.mxu0 0
    %1526 = vmatpush1.bf16.msra.mxu0 0
    %1527 = vmatprep.subr.bf16.mxu0 0
    %1528 = vmatpush1.bf16.msra.mxu0 0
    %1529 = vmatprep.subr.bf16.mxu0 0
    %1530 = vmatpush1.bf16.msra.mxu0 0
    %1531 = vmatprep.subr.bf16.mxu0 0
    %1532 = vmatpush1.bf16.msra.mxu0 0
    %1533 = vmatprep.subr.bf16.mxu0 0
    %1534 = vmatpush1.bf16.msra.mxu0 0
    %1535 = vmatprep.subr.bf16.mxu0 0
    %1536 = vmatpush1.bf16.msra.mxu0 0
    %1537 = vmatprep.subr.bf16.mxu0 0
    %1538 = vmatpush1.bf16.msra.mxu0 0
    %1539 = vmatprep.subr.bf16.mxu0 0
    %1540 = vmatpush1.bf16.msra.mxu0 0
    %1541 = vmatprep.subr.bf16.mxu0 0
    %1542 = vmatpush1.bf16.msra.mxu0 0
    %1543 = vmatprep.subr.bf16.mxu0 0
    %1544 = vmatpush1.bf16.msra.mxu0 0
    %1545 = vmatprep.subr.bf16.mxu0 0
    %1546 = vmatpush1.bf16.msra.mxu0 0
    %1547 = vmatprep.subr.bf16.mxu0 0
    %1548 = vmatpush1.bf16.msra.mxu0 0
    %1549 = vmatprep.subr.bf16.mxu0 0
    %1550 = vmatpush1.bf16.msra.mxu0 0
    %1551 = vmatprep.mubr.bf16.mxu0 0
    %1552 = vmatmul.mubr.bf16.gmra.mrb[0].mxu0 %v1355
    %v1553 = vpop.f32.mrb[0].mxu0
    %v1554 = vadd.f32 %v1501, %v1553
    %v1555 = vpop.f32.mrb[0].mxu0
    %v1556 = vadd.f32 %v1503, %v1555
    %v1557 = vpop.f32.mrb[0].mxu0
    %v1558 = vadd.f32 %v1505, %v1557
    %v1559 = vpop.f32.mrb[0].mxu0
    %v1560 = vadd.f32 %v1507, %v1559
    %1561 = vmatprep.mubr.bf16.mxu0 0
    %1562 = vmatmul.mubr.bf16.gmra.mrb[0].mxu0 %v1358
    %v1563 = vpop.f32.mrb[0].mxu0
    %v1564 = vadd.f32 %v1511, %v1563
    %v1565 = vpop.f32.mrb[0].mxu0
    %v1566 = vadd.f32 %v1513, %v1565
    %v1567 = vpop.f32.mrb[0].mxu0
    %v1568 = vadd.f32 %v1515, %v1567
    %v1569 = vpop.f32.mrb[0].mxu0
    %v1570 = vadd.f32 %v1517, %v1569
    %1571 = vdwg.mxu0
    %1572 = vmatprep.subr.bf16.mxu0 %v964
    %1573 = vmatpush1.bf16.msra.mxu0 %v963
    %1574 = vmatprep.subr.bf16.mxu0 %v968
    %1575 = vmatpush1.bf16.msra.mxu0 %v967
    %1576 = vmatprep.subr.bf16.mxu0 %v972
    %1577 = vmatpush1.bf16.msra.mxu0 %v971
    %1578 = vmatprep.subr.bf16.mxu0 %v976
    %1579 = vmatpush1.bf16.msra.mxu0 %v975
    %1580 = vmatprep.subr.bf16.mxu0 %v980
    %1581 = vmatpush1.bf16.msra.mxu0 %v979
    %1582 = vmatprep.subr.bf16.mxu0 %v984
    %1583 = vmatpush1.bf16.msra.mxu0 %v983
    %1584 = vmatprep.subr.bf16.mxu0 %v988
    %1585 = vmatpush1.bf16.msra.mxu0 %v987
    %1586 = vmatprep.subr.bf16.mxu0 %v992
    %1587 = vmatpush1.bf16.msra.mxu0 %v991
    %1588 = vmatprep.subr.bf16.mxu0 %v996
    %1589 = vmatpush1.bf16.msra.mxu0 %v995
    %1590 = vmatprep.subr.bf16.mxu0 %v1000
    %1591 = vmatpush1.bf16.msra.mxu0 %v999
    %1592 = vmatprep.subr.bf16.mxu0 %v1004
    %1593 = vmatpush1.bf16.msra.mxu0 %v1003
    %1594 = vmatprep.subr.bf16.mxu0 %v1008
    %1595 = vmatpush1.bf16.msra.mxu0 %v1007
    %1596 = vmatprep.subr.bf16.mxu0 %v1012
    %1597 = vmatpush1.bf16.msra.mxu0 %v1011
    %1598 = vmatprep.subr.bf16.mxu0 %v1016
    %1599 = vmatpush1.bf16.msra.mxu0 %v1015
    %1600 = vmatprep.subr.bf16.mxu0 %v1020
    %1601 = vmatpush1.bf16.msra.mxu0 %v1019
    %1602 = vmatprep.subr.bf16.mxu0 %v1024
    %1603 = vmatpush1.bf16.msra.mxu0 %v1023
    %1604 = vmatprep.mubr.bf16.mxu0 %v142
    %1605 = vmatmul.mubr.bf16.gmra.mrb[0].mxu0 %v141
    %v1606 = vpop.f32.mrb[0].mxu0
    %v1607 = vadd.f32 %v364, %v1606
    %v1608 = vpop.f32.mrb[0].mxu0
    %v1609 = vadd.f32 %v368, %v1608
    %v1610 = vpop.f32.mrb[0].mxu0
    %v1611 = vadd.f32 %v364, %v1610
    %v1612 = vpop.f32.mrb[0].mxu0
    %v1613 = vadd.f32 %v368, %v1612
    %1614 = vmatprep.mubr.bf16.mxu0 %v149
    %1615 = vmatmul.mubr.bf16.gmra.mrb[0].mxu0 %v148
    %v1616 = vpop.f32.mrb[0].mxu0
    %v1617 = vadd.f32 %v364, %v1616
    %v1618 = vpop.f32.mrb[0].mxu0
    %v1619 = vadd.f32 %v368, %v1618
    %v1620 = vpop.f32.mrb[0].mxu0
    %v1621 = vadd.f32 %v364, %v1620
    %v1622 = vpop.f32.mrb[0].mxu0
    %v1623 = vadd.f32 %v368, %v1622
    %1624 = vdwg.mxu0
    %1625 = vmatprep.subr.bf16.mxu0 %v1028
    %1626 = vmatpush1.bf16.msra.mxu0 %v1027
    %1627 = vmatprep.subr.bf16.mxu0 %v1032
    %1628 = vmatpush1.bf16.msra.mxu0 %v1031
    %1629 = vmatprep.subr.bf16.mxu0 %v1036
    %1630 = vmatpush1.bf16.msra.mxu0 %v1035
    %1631 = vmatprep.subr.bf16.mxu0 %v1040
    %1632 = vmatpush1.bf16.msra.mxu0 %v1039
    %1633 = vmatprep.subr.bf16.mxu0 %v1044
    %1634 = vmatpush1.bf16.msra.mxu0 %v1043
    %1635 = vmatprep.subr.bf16.mxu0 %v1048
    %1636 = vmatpush1.bf16.msra.mxu0 %v1047
    %1637 = vmatprep.subr.bf16.mxu0 %v1052
    %1638 = vmatpush1.bf16.msra.mxu0 %v1051
    %1639 = vmatprep.subr.bf16.mxu0 %v1056
    %1640 = vmatpush1.bf16.msra.mxu0 %v1055
    %1641 = vmatprep.subr.bf16.mxu0 %v1060
    %1642 = vmatpush1.bf16.msra.mxu0 %v1059
    %1643 = vmatprep.subr.bf16.mxu0 %v1064
    %1644 = vmatpush1.bf16.msra.mxu0 %v1063
    %1645 = vmatprep.subr.bf16.mxu0 %v1068
    %1646 = vmatpush1.bf16.msra.mxu0 %v1067
    %1647 = vmatprep.subr.bf16.mxu0 %v1072
    %1648 = vmatpush1.bf16.msra.mxu0 %v1071
    %1649 = vmatprep.subr.bf16.mxu0 %v1076
    %1650 = vmatpush1.bf16.msra.mxu0 %v1075
    %1651 = vmatprep.subr.bf16.mxu0 %v1080
    %1652 = vmatpush1.bf16.msra.mxu0 %v1079
    %1653 = vmatprep.subr.bf16.mxu0 %v1084
    %1654 = vmatpush1.bf16.msra.mxu0 %v1083
    %1655 = vmatprep.subr.bf16.mxu0 %v1088
    %1656 = vmatpush1.bf16.msra.mxu0 %v1087
    %1657 = vmatprep.mubr.bf16.mxu0 %v144
    %1658 = vmatmul.mubr.bf16.gmra.mrb[0].mxu0 %v143
    %v1659 = vpop.f32.mrb[0].mxu0
    %v1660 = vadd.f32 %v1607, %v1659
    %v1661 = vpop.f32.mrb[0].mxu0
    %v1662 = vadd.f32 %v1609, %v1661
    %v1663 = vpop.f32.mrb[0].mxu0
    %v1664 = vadd.f32 %v1611, %v1663
    %v1665 = vpop.f32.mrb[0].mxu0
    %v1666 = vadd.f32 %v1613, %v1665
    %1667 = vmatprep.mubr.bf16.mxu0 %v151
    %1668 = vmatmul.mubr.bf16.gmra.mrb[0].mxu0 %v150
    %v1669 = vpop.f32.mrb[0].mxu0
    %v1670 = vadd.f32 %v1617, %v1669
    %v1671 = vpop.f32.mrb[0].mxu0
    %v1672 = vadd.f32 %v1619, %v1671
    %v1673 = vpop.f32.mrb[0].mxu0
    %v1674 = vadd.f32 %v1621, %v1673
    %v1675 = vpop.f32.mrb[0].mxu0
    %v1676 = vadd.f32 %v1623, %v1675
    %1677 = vdwg.mxu0
    %1678 = vmatprep.subr.bf16.mxu0 %v1092
    %1679 = vmatpush1.bf16.msra.mxu0 %v1091
    %1680 = vmatprep.subr.bf16.mxu0 %v1096
    %1681 = vmatpush1.bf16.msra.mxu0 %v1095
    %1682 = vmatprep.subr.bf16.mxu0 %v1100
    %1683 = vmatpush1.bf16.msra.mxu0 %v1099
    %1684 = vmatprep.subr.bf16.mxu0 %v1104
    %1685 = vmatpush1.bf16.msra.mxu0 %v1103
    %1686 = vmatprep.subr.bf16.mxu0 %v1108
    %1687 = vmatpush1.bf16.msra.mxu0 %v1107
    %1688 = vmatprep.subr.bf16.mxu0 %v1112
    %1689 = vmatpush1.bf16.msra.mxu0 %v1111
    %1690 = vmatprep.subr.bf16.mxu0 %v1116
    %1691 = vmatpush1.bf16.msra.mxu0 %v1115
    %1692 = vmatprep.subr.bf16.mxu0 %v1120
    %1693 = vmatpush1.bf16.msra.mxu0 %v1119
    %1694 = vmatprep.subr.bf16.mxu0 %v1124
    %1695 = vmatpush1.bf16.msra.mxu0 %v1123
    %1696 = vmatprep.subr.bf16.mxu0 %v1128
    %1697 = vmatpush1.bf16.msra.mxu0 %v1127
    %1698 = vmatprep.subr.bf16.mxu0 %v1132
    %1699 = vmatpush1.bf16.msra.mxu0 %v1131
    %1700 = vmatprep.subr.bf16.mxu0 %v1136
    %1701 = vmatpush1.bf16.msra.mxu0 %v1135
    %1702 = vmatprep.subr.bf16.mxu0 %v1140
    %1703 = vmatpush1.bf16.msra.mxu0 %v1139
    %1704 = vmatprep.subr.bf16.mxu0 %v1144
    %1705 = vmatpush1.bf16.msra.mxu0 %v1143
    %1706 = vmatprep.subr.bf16.mxu0 %v1148
    %1707 = vmatpush1.bf16.msra.mxu0 %v1147
    %1708 = vmatprep.subr.bf16.mxu0 %v1152
    %1709 = vmatpush1.bf16.msra.mxu0 %v1151
    %1710 = vmatprep.mubr.bf16.mxu0 %v146
    %1711 = vmatmul.mubr.bf16.gmra.mrb[0].mxu0 %v145
    %v1712 = vpop.f32.mrb[0].mxu0
    %v1713 = vadd.f32 %v1660, %v1712
    %v1714 = vpop.f32.mrb[0].mxu0
    %v1715 = vadd.f32 %v1662, %v1714
    %v1716 = vpop.f32.mrb[0].mxu0
    %v1717 = vadd.f32 %v1664, %v1716
    %v1718 = vpop.f32.mrb[0].mxu0
    %v1719 = vadd.f32 %v1666, %v1718
    %1720 = vmatprep.mubr.bf16.mxu0 %v153
    %1721 = vmatmul.mubr.bf16.gmra.mrb[0].mxu0 %v152
    %v1722 = vpop.f32.mrb[0].mxu0
    %v1723 = vadd.f32 %v1670, %v1722
    %v1724 = vpop.f32.mrb[0].mxu0
    %v1725 = vadd.f32 %v1672, %v1724
    %v1726 = vpop.f32.mrb[0].mxu0
    %v1727 = vadd.f32 %v1674, %v1726
    %v1728 = vpop.f32.mrb[0].mxu0
    %v1729 = vadd.f32 %v1676, %v1728
    %1730 = vdwg.mxu0
    %1731 = vmatprep.subr.bf16.mxu0 %v1156
    %1732 = vmatpush1.bf16.msra.mxu0 %v1155
    %1733 = vmatprep.subr.bf16.mxu0 0
    %1734 = vmatpush1.bf16.msra.mxu0 0
    %1735 = vmatprep.subr.bf16.mxu0 0
    %1736 = vmatpush1.bf16.msra.mxu0 0
    %1737 = vmatprep.subr.bf16.mxu0 0
    %1738 = vmatpush1.bf16.msra.mxu0 0
    %1739 = vmatprep.subr.bf16.mxu0 0
    %1740 = vmatpush1.bf16.msra.mxu0 0
    %1741 = vmatprep.subr.bf16.mxu0 0
    %1742 = vmatpush1.bf16.msra.mxu0 0
    %1743 = vmatprep.subr.bf16.mxu0 0
    %1744 = vmatpush1.bf16.msra.mxu0 0
    %1745 = vmatprep.subr.bf16.mxu0 0
    %1746 = vmatpush1.bf16.msra.mxu0 0
    %1747 = vmatprep.subr.bf16.mxu0 0
    %1748 = vmatpush1.bf16.msra.mxu0 0
    %1749 = vmatprep.subr.bf16.mxu0 0
    %1750 = vmatpush1.bf16.msra.mxu0 0
    %1751 = vmatprep.subr.bf16.mxu0 0
    %1752 = vmatpush1.bf16.msra.mxu0 0
    %1753 = vmatprep.subr.bf16.mxu0 0
    %1754 = vmatpush1.bf16.msra.mxu0 0
    %1755 = vmatprep.subr.bf16.mxu0 0
    %1756 = vmatpush1.bf16.msra.mxu0 0
    %1757 = vmatprep.subr.bf16.mxu0 0
    %1758 = vmatpush1.bf16.msra.mxu0 0
    %1759 = vmatprep.subr.bf16.mxu0 0
    %1760 = vmatpush1.bf16.msra.mxu0 0
    %1761 = vmatprep.subr.bf16.mxu0 0
    %1762 = vmatpush1.bf16.msra.mxu0 0
    %1763 = vmatprep.mubr.bf16.mxu0 0
    %1764 = vmatmul.mubr.bf16.gmra.mrb[0].mxu0 %v1355
    %v1765 = vpop.f32.mrb[0].mxu0
    %v1766 = vadd.f32 %v1713, %v1765
    %v1767 = vpop.f32.mrb[0].mxu0
    %v1768 = vadd.f32 %v1715, %v1767
    %v1769 = vpop.f32.mrb[0].mxu0
    %v1770 = vadd.f32 %v1717, %v1769
    %v1771 = vpop.f32.mrb[0].mxu0
    %v1772 = vadd.f32 %v1719, %v1771
    %1773 = vmatprep.mubr.bf16.mxu0 0
    %1774 = vmatmul.mubr.bf16.gmra.mrb[0].mxu0 %v1358
    %v1775 = vpop.f32.mrb[0].mxu0
    %v1776 = vadd.f32 %v1723, %v1775
    %v1777 = vpop.f32.mrb[0].mxu0
    %v1778 = vadd.f32 %v1725, %v1777
    %v1779 = vpop.f32.mrb[0].mxu0
    %v1780 = vadd.f32 %v1727, %v1779
    %v1781 = vpop.f32.mrb[0].mxu0
    %v1782 = vadd.f32 %v1729, %v1781
    %1783 = vdwg.mxu0
    %v1784 = vpack.c.bf16 %v1558, %v1554
    %v1785 = vpack.c.bf16 %v1560, %v1556
    %v1786 = vpack.c.bf16 %v1770, %v1766
    %v1787 = vpack.c.bf16 %v1772, %v1768
    %v1788 = vpack.c.bf16 %v1568, %v1564
    %v1789 = vpack.c.bf16 %v1570, %v1566
    %v1790 = vpack.c.bf16 %v1780, %v1776
    %v1791 = vpack.c.bf16 %v1782, %v1778
    %v1792 = vld [vmem:[#allocation7] sm:$0xff]
    %v1793 = vld [vmem:[#allocation7 + $0x8] sm:$0xff]
    %v1794 = vld [vmem:[#allocation7 + $0x10] sm:$0xff]
    %v1795 = vld [vmem:[#allocation7 + $0x18] sm:$0xff]
    %v1796 = vld [vmem:[#allocation7 + $0x20] sm:$0xff]
    %v1797 = vld [vmem:[#allocation7 + $0x28] sm:$0xff]
    %v1798 = vld [vmem:[#allocation7 + $0x30] sm:$0xff]
    %v1799 = vld [vmem:[#allocation7 + $0x38] sm:$0xff]
    %v1800 = vld [vmem:[#allocation7 + $0x40] sm:$0xff]
    %v1801 = vld [vmem:[#allocation7 + $0x48] sm:$0xff]
    %v1802 = vld [vmem:[#allocation7 + $0x50] sm:$0xff]
    %v1803 = vld [vmem:[#allocation7 + $0x58] sm:$0xff]
    %v1804 = vld [vmem:[#allocation7 + $0x60] sm:$0xff]
    %v1805 = vld [vmem:[#allocation7 + $0x68] sm:$0xff]
    %v1806 = vld [vmem:[#allocation7 + $0x70] sm:$0xff]
    %v1807 = vld [vmem:[#allocation7 + $0x78] sm:$0xff]
    %v1808 = vld [vmem:[#allocation7 + $0x80] sm:$0xff]
    %v1809 = vld [vmem:[#allocation7 + $0x88] sm:$0xff]
    %v1810 = vld [vmem:[#allocation7 + $0x90] sm:$0xff]
    %v1811 = vld [vmem:[#allocation7 + $0x98] sm:$0xff]
    %v1812 = vld [vmem:[#allocation7 + $0xa0] sm:$0xff]
    %v1813 = vld [vmem:[#allocation7 + $0xa8] sm:$0xff]
    %v1814 = vld [vmem:[#allocation7 + $0xb0] sm:$0xff]
    %v1815 = vld [vmem:[#allocation7 + $0xb8] sm:$0xff]
    %v1816 = vld [vmem:[#allocation7 + $0xc0] sm:$0xff]
    %v1817 = vld [vmem:[#allocation7 + $0xc8] sm:$0xff]
    %v1818 = vld [vmem:[#allocation7 + $0xd0] sm:$0xff]
    %v1819 = vld [vmem:[#allocation7 + $0xd8] sm:$0xff]
    %v1820 = vld [vmem:[#allocation7 + $0xe0] sm:$0xff]
    %v1821 = vld [vmem:[#allocation7 + $0xe8] sm:$0xff]
    %v1822 = vld [vmem:[#allocation7 + $0xf0] sm:$0xff]
    %v1823 = vld [vmem:[#allocation7 + $0xf8] sm:$0xff]
    %v1824 = vld [vmem:[#allocation7 + $0x100] sm:$0xff]
    %v1825 = vld [vmem:[#allocation7 + $0x108] sm:$0xff]
    %v1826 = vld [vmem:[#allocation7 + $0x110] sm:$0xff]
    %v1827 = vld [vmem:[#allocation7 + $0x118] sm:$0xff]
    %v1828 = vld [vmem:[#allocation7 + $0x120] sm:$0xff]
    %v1829 = vld [vmem:[#allocation7 + $0x128] sm:$0xff]
    %v1830 = vld [vmem:[#allocation7 + $0x130] sm:$0xff]
    %v1831 = vld [vmem:[#allocation7 + $0x138] sm:$0xff]
    %v1832 = vld [vmem:[#allocation7 + $0x140] sm:$0xff]
    %v1833 = vld [vmem:[#allocation7 + $0x148] sm:$0xff]
    %v1834 = vld [vmem:[#allocation7 + $0x150] sm:$0xff]
    %v1835 = vld [vmem:[#allocation7 + $0x158] sm:$0xff]
    %v1836 = vld [vmem:[#allocation7 + $0x160] sm:$0xff]
    %v1837 = vld [vmem:[#allocation7 + $0x168] sm:$0xff]
    %v1838 = vld [vmem:[#allocation7 + $0x170] sm:$0xff]
    %v1839 = vld [vmem:[#allocation7 + $0x178] sm:$0xff]
    %v1840 = vld [vmem:[#allocation7 + $0x180] sm:$0xff]
    %v1841 = vld [vmem:[#allocation7 + $0x188] sm:$0xff]
    %v1842 = vld [vmem:[#allocation7 + $0x190] sm:$0xff]
    %v1843 = vld [vmem:[#allocation7 + $0x198] sm:$0xff]
    %v1844 = vld [vmem:[#allocation7 + $0x1a0] sm:$0xff]
    %v1845 = vld [vmem:[#allocation7 + $0x1a8] sm:$0xff]
    %v1846 = vld [vmem:[#allocation7 + $0x1b0] sm:$0xff]
    %v1847 = vld [vmem:[#allocation7 + $0x1b8] sm:$0xff]
    %v1848 = vld [vmem:[#allocation7 + $0x1c0] sm:$0xff]
    %v1849 = vld [vmem:[#allocation7 + $0x1c8] sm:$0xff]
    %v1850 = vld [vmem:[#allocation7 + $0x1d0] sm:$0xff]
    %v1851 = vld [vmem:[#allocation7 + $0x1d8] sm:$0xff]
    %v1852 = vld [vmem:[#allocation7 + $0x1e0] sm:$0xff]
    %v1853 = vld [vmem:[#allocation7 + $0x1e8] sm:$0xff]
    %v1854 = vld [vmem:[#allocation7 + $0x1f0] sm:$0xff]
    %v1855 = vld [vmem:[#allocation7 + $0x1f8] sm:$0xff]
    %v1856 = vld [vmem:[%s4] sm:$0x3]
    %v1858 = vlaneseq
    %v1859 = vshrl.u32 %v1858, 7
    %v1860 = vsub.s32 0, %v1859
    %v1861 = vrot.slane %v1856, %v1860
    %v1862 = vlaneseq
    %v1863 = vshrl.u32 %v1862, 7
    %v1864 = vsub.s32 1, %v1863
    %v1865 = vrot.slane %v1856, %v1864
    %v1932 = vunpack.c.l.b16 %v1792
    %v1933 = vunpack.c.h.b16 %v1792
    %v1934 = vunpack.c.l.b16 %v1793
    %v1935 = vunpack.c.h.b16 %v1793
    %v1936 = vunpack.c.l.b16 %v1794
    %v1937 = vunpack.c.h.b16 %v1794
    %v1938 = vunpack.c.l.b16 %v1795
    %v1939 = vunpack.c.h.b16 %v1795
    %v1940 = vunpack.c.l.b16 %v1796
    %v1941 = vunpack.c.h.b16 %v1796
    %v1942 = vunpack.c.l.b16 %v1797
    %v1943 = vunpack.c.h.b16 %v1797
    %v1944 = vunpack.c.l.b16 %v1798
    %v1945 = vunpack.c.h.b16 %v1798
    %v1946 = vunpack.c.l.b16 %v1799
    %v1947 = vunpack.c.h.b16 %v1799
    %v1948 = vunpack.c.l.b16 %v1800
    %v1949 = vunpack.c.h.b16 %v1800
    %v1950 = vunpack.c.l.b16 %v1801
    %v1951 = vunpack.c.h.b16 %v1801
    %v1952 = vunpack.c.l.b16 %v1802
    %v1953 = vunpack.c.h.b16 %v1802
    %v1954 = vunpack.c.l.b16 %v1803
    %v1955 = vunpack.c.h.b16 %v1803
    %v1956 = vunpack.c.l.b16 %v1804
    %v1957 = vunpack.c.h.b16 %v1804
    %v1958 = vunpack.c.l.b16 %v1805
    %v1959 = vunpack.c.h.b16 %v1805
    %v1960 = vunpack.c.l.b16 %v1806
    %v1961 = vunpack.c.h.b16 %v1806
    %v1962 = vunpack.c.l.b16 %v1807
    %v1963 = vunpack.c.h.b16 %v1807
    %v1964 = vunpack.c.l.b16 %v1808
    %v1965 = vunpack.c.h.b16 %v1808
    %v1966 = vunpack.c.l.b16 %v1809
    %v1967 = vunpack.c.h.b16 %v1809
    %v1968 = vunpack.c.l.b16 %v1810
    %v1969 = vunpack.c.h.b16 %v1810
    %v1970 = vunpack.c.l.b16 %v1811
    %v1971 = vunpack.c.h.b16 %v1811
    %v1972 = vunpack.c.l.b16 %v1812
    %v1973 = vunpack.c.h.b16 %v1812
    %v1974 = vunpack.c.l.b16 %v1813
    %v1975 = vunpack.c.h.b16 %v1813
    %v1976 = vunpack.c.l.b16 %v1814
    %v1977 = vunpack.c.h.b16 %v1814
    %v1978 = vunpack.c.l.b16 %v1815
    %v1979 = vunpack.c.h.b16 %v1815
    %v1980 = vunpack.c.l.b16 %v1816
    %v1981 = vunpack.c.h.b16 %v1816
    %v1982 = vunpack.c.l.b16 %v1817
    %v1983 = vunpack.c.h.b16 %v1817
    %v1984 = vunpack.c.l.b16 %v1818
    %v1985 = vunpack.c.h.b16 %v1818
    %v1986 = vunpack.c.l.b16 %v1819
    %v1987 = vunpack.c.h.b16 %v1819
    %v1988 = vunpack.c.l.b16 %v1820
    %v1989 = vunpack.c.h.b16 %v1820
    %v1990 = vunpack.c.l.b16 %v1821
    %v1991 = vunpack.c.h.b16 %v1821
    %v1992 = vunpack.c.l.b16 %v1822
    %v1993 = vunpack.c.h.b16 %v1822
    %v1994 = vunpack.c.l.b16 %v1823
    %v1995 = vunpack.c.h.b16 %v1823
    %v1996 = vunpack.c.l.b16 %v1824
    %v1997 = vunpack.c.h.b16 %v1824
    %v1998 = vunpack.c.l.b16 %v1825
    %v1999 = vunpack.c.h.b16 %v1825
    %v2000 = vunpack.c.l.b16 %v1826
    %v2001 = vunpack.c.h.b16 %v1826
    %v2002 = vunpack.c.l.b16 %v1827
    %v2003 = vunpack.c.h.b16 %v1827
    %v2004 = vunpack.c.l.b16 %v1828
    %v2005 = vunpack.c.h.b16 %v1828
    %v2006 = vunpack.c.l.b16 %v1829
    %v2007 = vunpack.c.h.b16 %v1829
    %v2008 = vunpack.c.l.b16 %v1830
    %v2009 = vunpack.c.h.b16 %v1830
    %v2010 = vunpack.c.l.b16 %v1831
    %v2011 = vunpack.c.h.b16 %v1831
    %v2012 = vunpack.c.l.b16 %v1832
    %v2013 = vunpack.c.h.b16 %v1832
    %v2014 = vunpack.c.l.b16 %v1833
    %v2015 = vunpack.c.h.b16 %v1833
    %v2016 = vunpack.c.l.b16 %v1834
    %v2017 = vunpack.c.h.b16 %v1834
    %v2018 = vunpack.c.l.b16 %v1835
    %v2019 = vunpack.c.h.b16 %v1835
    %v2020 = vunpack.c.l.b16 %v1836
    %v2021 = vunpack.c.h.b16 %v1836
    %v2022 = vunpack.c.l.b16 %v1837
    %v2023 = vunpack.c.h.b16 %v1837
    %v2024 = vunpack.c.l.b16 %v1838
    %v2025 = vunpack.c.h.b16 %v1838
    %v2026 = vunpack.c.l.b16 %v1839
    %v2027 = vunpack.c.h.b16 %v1839
    %v2028 = vunpack.c.l.b16 %v1840
    %v2029 = vunpack.c.h.b16 %v1840
    %v2030 = vunpack.c.l.b16 %v1841
    %v2031 = vunpack.c.h.b16 %v1841
    %v2032 = vunpack.c.l.b16 %v1842
    %v2033 = vunpack.c.h.b16 %v1842
    %v2034 = vunpack.c.l.b16 %v1843
    %v2035 = vunpack.c.h.b16 %v1843
    %v2036 = vunpack.c.l.b16 %v1844
    %v2037 = vunpack.c.h.b16 %v1844
    %v2038 = vunpack.c.l.b16 %v1845
    %v2039 = vunpack.c.h.b16 %v1845
    %v2040 = vunpack.c.l.b16 %v1846
    %v2041 = vunpack.c.h.b16 %v1846
    %v2042 = vunpack.c.l.b16 %v1847
    %v2043 = vunpack.c.h.b16 %v1847
    %v2044 = vunpack.c.l.b16 %v1848
    %v2045 = vunpack.c.h.b16 %v1848
    %v2046 = vunpack.c.l.b16 %v1849
    %v2047 = vunpack.c.h.b16 %v1849
    %v2048 = vunpack.c.l.b16 %v1850
    %v2049 = vunpack.c.h.b16 %v1850
    %v2050 = vunpack.c.l.b16 %v1851
    %v2051 = vunpack.c.h.b16 %v1851
    %v2052 = vunpack.c.l.b16 %v1852
    %v2053 = vunpack.c.h.b16 %v1852
    %v2054 = vunpack.c.l.b16 %v1853
    %v2055 = vunpack.c.h.b16 %v1853
    %v2056 = vunpack.c.l.b16 %v1854
    %v2057 = vunpack.c.h.b16 %v1854
    %v2058 = vunpack.c.l.b16 %v1855
    %v2059 = vunpack.c.h.b16 %v1855
    %v2060 = vpack.c.b16 %v1934, %v1932
    %v2061 = vpack.c.b16 %v1935, %v1933
    %v2062 = vpack.c.b16 %v1938, %v1936
    %v2063 = vpack.c.b16 %v1939, %v1937
    %v2064 = vpack.c.b16 %v1942, %v1940
    %v2065 = vpack.c.b16 %v1943, %v1941
    %v2066 = vpack.c.b16 %v1946, %v1944
    %v2067 = vpack.c.b16 %v1947, %v1945
    %v2068 = vpack.c.b16 %v1950, %v1948
    %v2069 = vpack.c.b16 %v1951, %v1949
    %v2070 = vpack.c.b16 %v1954, %v1952
    %v2071 = vpack.c.b16 %v1955, %v1953
    %v2072 = vpack.c.b16 %v1958, %v1956
    %v2073 = vpack.c.b16 %v1959, %v1957
    %v2074 = vpack.c.b16 %v1962, %v1960
    %v2075 = vpack.c.b16 %v1963, %v1961
    %v2076 = vpack.c.b16 %v1966, %v1964
    %v2077 = vpack.c.b16 %v1967, %v1965
    %v2078 = vpack.c.b16 %v1970, %v1968
    %v2079 = vpack.c.b16 %v1971, %v1969
    %v2080 = vpack.c.b16 %v1974, %v1972
    %v2081 = vpack.c.b16 %v1975, %v1973
    %v2082 = vpack.c.b16 %v1978, %v1976
    %v2083 = vpack.c.b16 %v1979, %v1977
    %v2084 = vpack.c.b16 %v1982, %v1980
    %v2085 = vpack.c.b16 %v1983, %v1981
    %v2086 = vpack.c.b16 %v1986, %v1984
    %v2087 = vpack.c.b16 %v1987, %v1985
    %v2088 = vpack.c.b16 %v1990, %v1988
    %v2089 = vpack.c.b16 %v1991, %v1989
    %v2090 = vpack.c.b16 %v1994, %v1992
    %v2091 = vpack.c.b16 %v1995, %v1993
    %v2092 = vpack.c.b16 %v1998, %v1996
    %v2093 = vpack.c.b16 %v1999, %v1997
    %v2094 = vpack.c.b16 %v2002, %v2000
    %v2095 = vpack.c.b16 %v2003, %v2001
    %v2096 = vpack.c.b16 %v2006, %v2004
    %v2097 = vpack.c.b16 %v2007, %v2005
    %v2098 = vpack.c.b16 %v2010, %v2008
    %v2099 = vpack.c.b16 %v2011, %v2009
    %v2100 = vpack.c.b16 %v2014, %v2012
    %v2101 = vpack.c.b16 %v2015, %v2013
    %v2102 = vpack.c.b16 %v2018, %v2016
    %v2103 = vpack.c.b16 %v2019, %v2017
    %v2104 = vpack.c.b16 %v2022, %v2020
    %v2105 = vpack.c.b16 %v2023, %v2021
    %v2106 = vpack.c.b16 %v2026, %v2024
    %v2107 = vpack.c.b16 %v2027, %v2025
    %v2108 = vpack.c.b16 %v2030, %v2028
    %v2109 = vpack.c.b16 %v2031, %v2029
    %v2110 = vpack.c.b16 %v2034, %v2032
    %v2111 = vpack.c.b16 %v2035, %v2033
    %v2112 = vpack.c.b16 %v2038, %v2036
    %v2113 = vpack.c.b16 %v2039, %v2037
    %v2114 = vpack.c.b16 %v2042, %v2040
    %v2115 = vpack.c.b16 %v2043, %v2041
    %v2116 = vpack.c.b16 %v2046, %v2044
    %v2117 = vpack.c.b16 %v2047, %v2045
    %v2118 = vpack.c.b16 %v2050, %v2048
    %v2119 = vpack.c.b16 %v2051, %v2049
    %v2120 = vpack.c.b16 %v2054, %v2052
    %v2121 = vpack.c.b16 %v2055, %v2053
    %v2122 = vpack.c.b16 %v2058, %v2056
    %v2123 = vpack.c.b16 %v2059, %v2057
    %2188 = vmatprep.subr.bf16.mxu0 %v2061
    %2189 = vmatpush1.bf16.msra.mxu0 %v2060
    %2190 = vmatprep.subr.bf16.mxu0 %v2063
    %2191 = vmatpush1.bf16.msra.mxu0 %v2062
    %2192 = vmatprep.subr.bf16.mxu0 %v2065
    %2193 = vmatpush1.bf16.msra.mxu0 %v2064
    %2194 = vmatprep.subr.bf16.mxu0 %v2067
    %2195 = vmatpush1.bf16.msra.mxu0 %v2066
    %2196 = vmatprep.subr.bf16.mxu0 %v2069
    %2197 = vmatpush1.bf16.msra.mxu0 %v2068
    %2198 = vmatprep.subr.bf16.mxu0 %v2071
    %2199 = vmatpush1.bf16.msra.mxu0 %v2070
    %2200 = vmatprep.subr.bf16.mxu0 %v2073
    %2201 = vmatpush1.bf16.msra.mxu0 %v2072
    %2202 = vmatprep.subr.bf16.mxu0 %v2075
    %2203 = vmatpush1.bf16.msra.mxu0 %v2074
    %2204 = vmatprep.subr.bf16.mxu0 %v2077
    %2205 = vmatpush1.bf16.msra.mxu0 %v2076
    %2206 = vmatprep.subr.bf16.mxu0 %v2079
    %2207 = vmatpush1.bf16.msra.mxu0 %v2078
    %2208 = vmatprep.subr.bf16.mxu0 %v2081
    %2209 = vmatpush1.bf16.msra.mxu0 %v2080
    %2210 = vmatprep.subr.bf16.mxu0 %v2083
    %2211 = vmatpush1.bf16.msra.mxu0 %v2082
    %2212 = vmatprep.subr.bf16.mxu0 %v2085
    %2213 = vmatpush1.bf16.msra.mxu0 %v2084
    %2214 = vmatprep.subr.bf16.mxu0 %v2087
    %2215 = vmatpush1.bf16.msra.mxu0 %v2086
    %2216 = vmatprep.subr.bf16.mxu0 %v2089
    %2217 = vmatpush1.bf16.msra.mxu0 %v2088
    %2218 = vmatprep.subr.bf16.mxu0 %v2091
    %2219 = vmatpush1.bf16.msra.mxu0 %v2090
    %2220 = vmatprep.mubr.bf16.mxu0 %v1785
    %2221 = vmatmul.mubr.bf16.gmra.mrb[0].mxu0 %v1784
    %v2222 = vpop.f32.mrb[0].mxu0
    %v2223 = vadd.f32 %v1861, %v2222
    %v2224 = vpop.f32.mrb[0].mxu0
    %v2225 = vadd.f32 %v1865, %v2224
    %v2226 = vpop.f32.mrb[0].mxu0
    %v2227 = vadd.f32 %v1861, %v2226
    %v2228 = vpop.f32.mrb[0].mxu0
    %v2229 = vadd.f32 %v1865, %v2228
    %2230 = vmatprep.mubr.bf16.mxu0 %v1789
    %2231 = vmatmul.mubr.bf16.gmra.mrb[0].mxu0 %v1788
    %v2232 = vpop.f32.mrb[0].mxu0
    %v2233 = vadd.f32 %v1861, %v2232
    %v2234 = vpop.f32.mrb[0].mxu0
    %v2235 = vadd.f32 %v1865, %v2234
    %v2236 = vpop.f32.mrb[0].mxu0
    %v2237 = vadd.f32 %v1861, %v2236
    %v2238 = vpop.f32.mrb[0].mxu0
    %v2239 = vadd.f32 %v1865, %v2238
    %2240 = vdwg.mxu0
    %2241 = vmatprep.subr.bf16.mxu0 %v2093
    %2242 = vmatpush1.bf16.msra.mxu0 %v2092
    %2243 = vmatprep.subr.bf16.mxu0 %v2095
    %2244 = vmatpush1.bf16.msra.mxu0 %v2094
    %2245 = vmatprep.subr.bf16.mxu0 %v2097
    %2246 = vmatpush1.bf16.msra.mxu0 %v2096
    %2247 = vmatprep.subr.bf16.mxu0 %v2099
    %2248 = vmatpush1.bf16.msra.mxu0 %v2098
    %2249 = vmatprep.subr.bf16.mxu0 %v2101
    %2250 = vmatpush1.bf16.msra.mxu0 %v2100
    %2251 = vmatprep.subr.bf16.mxu0 %v2103
    %2252 = vmatpush1.bf16.msra.mxu0 %v2102
    %2253 = vmatprep.subr.bf16.mxu0 %v2105
    %2254 = vmatpush1.bf16.msra.mxu0 %v2104
    %2255 = vmatprep.subr.bf16.mxu0 %v2107
    %2256 = vmatpush1.bf16.msra.mxu0 %v2106
    %2257 = vmatprep.subr.bf16.mxu0 %v2109
    %2258 = vmatpush1.bf16.msra.mxu0 %v2108
    %2259 = vmatprep.subr.bf16.mxu0 %v2111
    %2260 = vmatpush1.bf16.msra.mxu0 %v2110
    %2261 = vmatprep.subr.bf16.mxu0 %v2113
    %2262 = vmatpush1.bf16.msra.mxu0 %v2112
    %2263 = vmatprep.subr.bf16.mxu0 %v2115
    %2264 = vmatpush1.bf16.msra.mxu0 %v2114
    %2265 = vmatprep.subr.bf16.mxu0 %v2117
    %2266 = vmatpush1.bf16.msra.mxu0 %v2116
    %2267 = vmatprep.subr.bf16.mxu0 %v2119
    %2268 = vmatpush1.bf16.msra.mxu0 %v2118
    %2269 = vmatprep.subr.bf16.mxu0 %v2121
    %2270 = vmatpush1.bf16.msra.mxu0 %v2120
    %2271 = vmatprep.subr.bf16.mxu0 %v2123
    %2272 = vmatpush1.bf16.msra.mxu0 %v2122
    %2273 = vmatprep.mubr.bf16.mxu0 %v1787
    %2274 = vmatmul.mubr.bf16.gmra.mrb[0].mxu0 %v1786
    %v2275 = vpop.f32.mrb[0].mxu0
    %v2276 = vadd.f32 %v2223, %v2275
    %v2277 = vpop.f32.mrb[0].mxu0
    %v2278 = vadd.f32 %v2225, %v2277
    %v2279 = vpop.f32.mrb[0].mxu0
    %v2280 = vadd.f32 %v2227, %v2279
    %v2281 = vpop.f32.mrb[0].mxu0
    %v2282 = vadd.f32 %v2229, %v2281
    %2283 = vmatprep.mubr.bf16.mxu0 %v1791
    %2284 = vmatmul.mubr.bf16.gmra.mrb[0].mxu0 %v1790
    %v2285 = vpop.f32.mrb[0].mxu0
    %v2286 = vadd.f32 %v2233, %v2285
    %v2287 = vpop.f32.mrb[0].mxu0
    %v2288 = vadd.f32 %v2235, %v2287
    %v2289 = vpop.f32.mrb[0].mxu0
    %v2290 = vadd.f32 %v2237, %v2289
    %v2291 = vpop.f32.mrb[0].mxu0
    %v2292 = vadd.f32 %v2239, %v2291
    %2293 = vdwg.mxu0
    %v2294 = vpack.c.bf16 %v2280, %v2276
    %v2295 = vpack.c.bf16 %v2282, %v2278
    %v2296 = vpack.c.bf16 %v2290, %v2286
    %v2297 = vpack.c.bf16 %v2292, %v2288
    %v2298 = vld [vmem:[#allocation9] sm:$0xf]
    %v2299 = vld [vmem:[#allocation9 + $0x4] sm:$0xf]
    %v2300 = vld [vmem:[#allocation9 + $0x8] sm:$0xf]
    %v2301 = vld [vmem:[#allocation9 + $0xc] sm:$0xf]
    %v2302 = vld [vmem:[#allocation9 + $0x10] sm:$0xf]
    %v2303 = vld [vmem:[#allocation9 + $0x14] sm:$0xf]
    %v2304 = vld [vmem:[#allocation9 + $0x18] sm:$0xf]
    %v2305 = vld [vmem:[#allocation9 + $0x1c] sm:$0xf]
    %v2306 = vld [vmem:[#allocation9 + $0x20] sm:$0xf]
    %v2307 = vld [vmem:[#allocation9 + $0x24] sm:$0xf]
    %v2308 = vld [vmem:[#allocation9 + $0x28] sm:$0xf]
    %v2309 = vld [vmem:[#allocation9 + $0x2c] sm:$0xf]
    %v2310 = vld [vmem:[#allocation9 + $0x30] sm:$0xf]
    %v2311 = vld [vmem:[#allocation9 + $0x34] sm:$0xf]
    %v2312 = vld [vmem:[#allocation9 + $0x38] sm:$0xf]
    %v2313 = vld [vmem:[#allocation9 + $0x3c] sm:$0xf]
    %v2314 = vld [vmem:[#allocation9 + $0x40] sm:$0xf]
    %v2315 = vld [vmem:[#allocation9 + $0x44] sm:$0xf]
    %v2316 = vld [vmem:[#allocation9 + $0x48] sm:$0xf]
    %v2317 = vld [vmem:[#allocation9 + $0x4c] sm:$0xf]
    %v2318 = vld [vmem:[#allocation9 + $0x50] sm:$0xf]
    %v2319 = vld [vmem:[#allocation9 + $0x54] sm:$0xf]
    %v2320 = vld [vmem:[#allocation9 + $0x58] sm:$0xf]
    %v2321 = vld [vmem:[#allocation9 + $0x5c] sm:$0xf]
    %v2322 = vld [vmem:[#allocation9 + $0x60] sm:$0xf]
    %v2323 = vld [vmem:[#allocation9 + $0x64] sm:$0xf]
    %v2324 = vld [vmem:[#allocation9 + $0x68] sm:$0xf]
    %v2325 = vld [vmem:[#allocation9 + $0x6c] sm:$0xf]
    %v2326 = vld [vmem:[#allocation9 + $0x70] sm:$0xf]
    %v2327 = vld [vmem:[#allocation9 + $0x74] sm:$0xf]
    %v2328 = vld [vmem:[#allocation9 + $0x78] sm:$0xf]
    %v2329 = vld [vmem:[#allocation9 + $0x7c] sm:$0xf]
    %v2330 = vld [vmem:[%s6] sm:$0x1]
    %v2332 = vlaneseq
    %v2333 = vshrl.u32 %v2332, 7
    %v2334 = vsub.s32 0, %v2333
    %v2335 = vrot.slane %v2330, %v2334
    %v2369 = vunpack.c.l.b16 %v2298
    %v2370 = vunpack.c.l.b16 %v2299
    %v2371 = vunpack.c.l.b16 %v2300
    %v2372 = vunpack.c.l.b16 %v2301
    %v2373 = vunpack.c.l.b16 %v2302
    %v2374 = vunpack.c.l.b16 %v2303
    %v2375 = vunpack.c.l.b16 %v2304
    %v2376 = vunpack.c.l.b16 %v2305
    %v2377 = vunpack.c.l.b16 %v2306
    %v2378 = vunpack.c.l.b16 %v2307
    %v2379 = vunpack.c.l.b16 %v2308
    %v2380 = vunpack.c.l.b16 %v2309
    %v2381 = vunpack.c.l.b16 %v2310
    %v2382 = vunpack.c.l.b16 %v2311
    %v2383 = vunpack.c.l.b16 %v2312
    %v2384 = vunpack.c.l.b16 %v2313
    %v2385 = vunpack.c.l.b16 %v2314
    %v2386 = vunpack.c.l.b16 %v2315
    %v2387 = vunpack.c.l.b16 %v2316
    %v2388 = vunpack.c.l.b16 %v2317
    %v2389 = vunpack.c.l.b16 %v2318
    %v2390 = vunpack.c.l.b16 %v2319
    %v2391 = vunpack.c.l.b16 %v2320
    %v2392 = vunpack.c.l.b16 %v2321
    %v2393 = vunpack.c.l.b16 %v2322
    %v2394 = vunpack.c.l.b16 %v2323
    %v2395 = vunpack.c.l.b16 %v2324
    %v2396 = vunpack.c.l.b16 %v2325
    %v2397 = vunpack.c.l.b16 %v2326
    %v2398 = vunpack.c.l.b16 %v2327
    %v2399 = vunpack.c.l.b16 %v2328
    %v2400 = vunpack.c.l.b16 %v2329
    %v2401 = vpack.c.b16 %v2370, %v2369
    %v2402 = vpack.c.b16 %v2372, %v2371
    %v2403 = vpack.c.b16 %v2374, %v2373
    %v2404 = vpack.c.b16 %v2376, %v2375
    %v2405 = vpack.c.b16 %v2378, %v2377
    %v2406 = vpack.c.b16 %v2380, %v2379
    %v2407 = vpack.c.b16 %v2382, %v2381
    %v2408 = vpack.c.b16 %v2384, %v2383
    %v2409 = vpack.c.b16 %v2386, %v2385
    %v2410 = vpack.c.b16 %v2388, %v2387
    %v2411 = vpack.c.b16 %v2390, %v2389
    %v2412 = vpack.c.b16 %v2392, %v2391
    %v2413 = vpack.c.b16 %v2394, %v2393
    %v2414 = vpack.c.b16 %v2396, %v2395
    %v2415 = vpack.c.b16 %v2398, %v2397
    %v2416 = vpack.c.b16 %v2400, %v2399
    %2433 = vmatprep.subr.bf16.mxu0 0
    %2434 = vmatpush1.bf16.msra.mxu0 %v2401
    %2435 = vmatprep.subr.bf16.mxu0 0
    %2436 = vmatpush1.bf16.msra.mxu0 %v2402
    %2437 = vmatprep.subr.bf16.mxu0 0
    %2438 = vmatpush1.bf16.msra.mxu0 %v2403
    %2439 = vmatprep.subr.bf16.mxu0 0
    %2440 = vmatpush1.bf16.msra.mxu0 %v2404
    %2441 = vmatprep.subr.bf16.mxu0 0
    %2442 = vmatpush1.bf16.msra.mxu0 %v2405
    %2443 = vmatprep.subr.bf16.mxu0 0
    %2444 = vmatpush1.bf16.msra.mxu0 %v2406
    %2445 = vmatprep.subr.bf16.mxu0 0
    %2446 = vmatpush1.bf16.msra.mxu0 %v2407
    %2447 = vmatprep.subr.bf16.mxu0 0
    %2448 = vmatpush1.bf16.msra.mxu0 %v2408
    %2449 = vmatprep.subr.bf16.mxu0 0
    %2450 = vmatpush1.bf16.msra.mxu0 %v2409
    %2451 = vmatprep.subr.bf16.mxu0 0
    %2452 = vmatpush1.bf16.msra.mxu0 %v2410
    %2453 = vmatprep.subr.bf16.mxu0 0
    %2454 = vmatpush1.bf16.msra.mxu0 %v2411
    %2455 = vmatprep.subr.bf16.mxu0 0
    %2456 = vmatpush1.bf16.msra.mxu0 %v2412
    %2457 = vmatprep.subr.bf16.mxu0 0
    %2458 = vmatpush1.bf16.msra.mxu0 %v2413
    %2459 = vmatprep.subr.bf16.mxu0 0
    %2460 = vmatpush1.bf16.msra.mxu0 %v2414
    %2461 = vmatprep.subr.bf16.mxu0 0
    %2462 = vmatpush1.bf16.msra.mxu0 %v2415
    %2463 = vmatprep.subr.bf16.mxu0 0
    %2464 = vmatpush1.bf16.msra.mxu0 %v2416
    %2465 = vmatprep.mubr.bf16.mxu0 %v2295
    %2466 = vmatmul.mubr.bf16.gmra.mrb[0].mxu0 %v2294
    %v2467 = vpop.f32.mrb[0].mxu0
    %v2468 = vadd.f32 %v2335, %v2467
    %v2469 = vpop.f32.mrb[0].mxu0
    %v2470 = vpop.f32.mrb[0].mxu0
    %v2471 = vadd.f32 %v2335, %v2470
    %v2472 = vpop.f32.mrb[0].mxu0
    %2473 = vmatprep.mubr.bf16.mxu0 %v2297
    %2474 = vmatmul.mubr.bf16.gmra.mrb[0].mxu0 %v2296
    %v2475 = vpop.f32.mrb[0].mxu0
    %v2476 = vadd.f32 %v2335, %v2475
    %v2477 = vpop.f32.mrb[0].mxu0
    %v2478 = vpop.f32.mrb[0].mxu0
    %v2479 = vadd.f32 %v2335, %v2478
    %v2480 = vpop.f32.mrb[0].mxu0
    %2481 = vdwg.mxu0
    %v2482 = vpack.c.bf16 %v2471, %v2468
    %v2483 = vpack.c.bf16 %v2479, %v2476
    %v2484 = vld [vmem:[#allocation10] sm:$0xf]
    %v2485 = vld [vmem:[#allocation10 + $0x4] sm:$0xf]
    %v2486 = vld [vmem:[#allocation10 + $0x8] sm:$0xf]
    %v2487 = vld [vmem:[#allocation10 + $0xc] sm:$0xf]
    %v2488 = vld [vmem:[#allocation10 + $0x10] sm:$0xf]
    %v2489 = vld [vmem:[#allocation10 + $0x14] sm:$0xf]
    %v2490 = vld [vmem:[#allocation10 + $0x18] sm:$0xf]
    %v2491 = vld [vmem:[#allocation10 + $0x1c] sm:$0xf]
    %v2492 = vld [vmem:[#allocation10 + $0x20] sm:$0xf]
    %v2493 = vld [vmem:[#allocation10 + $0x24] sm:$0xf]
    %v2494 = vld [vmem:[#allocation10 + $0x28] sm:$0xf]
    %v2495 = vld [vmem:[#allocation10 + $0x2c] sm:$0xf]
    %v2496 = vld [vmem:[#allocation10 + $0x30] sm:$0xf]
    %v2497 = vld [vmem:[#allocation10 + $0x34] sm:$0xf]
    %v2498 = vld [vmem:[#allocation10 + $0x38] sm:$0xf]
    %v2499 = vld [vmem:[#allocation10 + $0x3c] sm:$0xf]
    %v2500 = vld [vmem:[%s8] sm:$0x1]
    %v2502 = vlaneseq
    %v2503 = vshrl.u32 %v2502, 7
    %v2504 = vsub.s32 0, %v2503
    %v2505 = vrot.slane %v2500, %v2504
    %v2523 = vunpack.c.l.b16 %v2484
    %v2524 = vunpack.c.l.b16 %v2485
    %v2525 = vunpack.c.l.b16 %v2486
    %v2526 = vunpack.c.l.b16 %v2487
    %v2527 = vunpack.c.l.b16 %v2488
    %v2528 = vunpack.c.l.b16 %v2489
    %v2529 = vunpack.c.l.b16 %v2490
    %v2530 = vunpack.c.l.b16 %v2491
    %v2531 = vunpack.c.l.b16 %v2492
    %v2532 = vunpack.c.l.b16 %v2493
    %v2533 = vunpack.c.l.b16 %v2494
    %v2534 = vunpack.c.l.b16 %v2495
    %v2535 = vunpack.c.l.b16 %v2496
    %v2536 = vunpack.c.l.b16 %v2497
    %v2537 = vunpack.c.l.b16 %v2498
    %v2538 = vunpack.c.l.b16 %v2499
    %v2539 = vpack.c.b16 %v2524, %v2523
    %v2540 = vpack.c.b16 %v2526, %v2525
    %v2541 = vpack.c.b16 %v2528, %v2527
    %v2542 = vpack.c.b16 %v2530, %v2529
    %v2543 = vpack.c.b16 %v2532, %v2531
    %v2544 = vpack.c.b16 %v2534, %v2533
    %v2545 = vpack.c.b16 %v2536, %v2535
    %v2546 = vpack.c.b16 %v2538, %v2537
    %2555 = vmatprep.subr.bf16.mxu0 0
    %2556 = vmatpush1.bf16.msra.mxu0 %v2539
    %2557 = vmatprep.subr.bf16.mxu0 0
    %2558 = vmatpush1.bf16.msra.mxu0 %v2540
    %2559 = vmatprep.subr.bf16.mxu0 0
    %2560 = vmatpush1.bf16.msra.mxu0 %v2541
    %2561 = vmatprep.subr.bf16.mxu0 0
    %2562 = vmatpush1.bf16.msra.mxu0 %v2542
    %2563 = vmatprep.subr.bf16.mxu0 0
    %2564 = vmatpush1.bf16.msra.mxu0 %v2543
    %2565 = vmatprep.subr.bf16.mxu0 0
    %2566 = vmatpush1.bf16.msra.mxu0 %v2544
    %2567 = vmatprep.subr.bf16.mxu0 0
    %2568 = vmatpush1.bf16.msra.mxu0 %v2545
    %2569 = vmatprep.subr.bf16.mxu0 0
    %2570 = vmatpush1.bf16.msra.mxu0 %v2546
    %2571 = vmatprep.subr.bf16.mxu0 0
    %2572 = vmatpush1.bf16.msra.mxu0 0
    %2573 = vmatprep.subr.bf16.mxu0 0
    %2574 = vmatpush1.bf16.msra.mxu0 0
    %2575 = vmatprep.subr.bf16.mxu0 0
    %2576 = vmatpush1.bf16.msra.mxu0 0
    %2577 = vmatprep.subr.bf16.mxu0 0
    %2578 = vmatpush1.bf16.msra.mxu0 0
    %2579 = vmatprep.subr.bf16.mxu0 0
    %2580 = vmatpush1.bf16.msra.mxu0 0
    %2581 = vmatprep.subr.bf16.mxu0 0
    %2582 = vmatpush1.bf16.msra.mxu0 0
    %2583 = vmatprep.subr.bf16.mxu0 0
    %2584 = vmatpush1.bf16.msra.mxu0 0
    %2585 = vmatprep.subr.bf16.mxu0 0
    %2586 = vmatpush1.bf16.msra.mxu0 0
    %2587 = vmatprep.mubr.bf16.mxu0 0
    %2588 = vmatmul.mubr.bf16.gmra.mrb[0].mxu0 %v2482
    %v2589 = vpop.f32.mrb[0].mxu0
    %v2590 = vadd.f32 %v2505, %v2589
    %v2591 = vpop.f32.mrb[0].mxu0
    %v2592 = vpop.f32.mrb[0].mxu0
    %v2593 = vadd.f32 %v2505, %v2592
    %v2594 = vpop.f32.mrb[0].mxu0
    %2595 = vmatprep.mubr.bf16.mxu0 0
    %2596 = vmatmul.mubr.bf16.gmra.mrb[0].mxu0 %v2483
    %v2597 = vpop.f32.mrb[0].mxu0
    %v2598 = vadd.f32 %v2505, %v2597
    %v2599 = vpop.f32.mrb[0].mxu0
    %v2600 = vpop.f32.mrb[0].mxu0
    %v2601 = vadd.f32 %v2505, %v2600
    %v2602 = vpop.f32.mrb[0].mxu0
    %2603 = vdwg.mxu0
    %2604 = vmax.xlane.f32.xlu0 %v2590
    %v2605 = vpop.xlane.xlu0 %2604
    %2606 = vmax.xlane.f32.xlu0 %v2593
    %v2607 = vpop.xlane.xlu0 %2606
    %2608 = vmax.xlane.f32.xlu0 %v2598
    %v2609 = vpop.xlane.xlu0 %2608
    %2610 = vmax.xlane.f32.xlu0 %v2601
    %v2611 = vpop.xlane.xlu0 %2610
    %v2612 = vsub.f32 %v2590, %v2605
    %v2613 = vsub.f32 %v2593, %v2607
    %v2614 = vsub.f32 %v2598, %v2609
    %v2615 = vsub.f32 %v2601, %v2611
    %v2616 = vmul.f32 %v2612, 1.442695
    %v2617 = vpow.pop %v2616
    %v2618 = vmul.f32 %v2613, 1.442695
    %v2619 = vpow.pop %v2618
    %v2620 = vmul.f32 %v2614, 1.442695
    %v2621 = vpow.pop %v2620
    %v2622 = vmul.f32 %v2615, 1.442695
    %v2623 = vpow.pop %v2622
    %2624 = vadd.xlane.f32.xlu0 %v2617
    %v2625 = vpop.xlane.xlu0 %2624
    %2626 = vadd.xlane.f32.xlu0 %v2619
    %v2627 = vpop.xlane.xlu0 %2626
    %2628 = vadd.xlane.f32.xlu0 %v2621
    %v2629 = vpop.xlane.xlu0 %2628
    %2630 = vadd.xlane.f32.xlu0 %v2623
    %v2631 = vpop.xlane.xlu0 %2630
    %v2632 = vrcp.pop %v2625
    %v2633 = vmul.f32 %v2617, %v2632
    %v2634 = vrcp.pop %v2627
    %v2635 = vmul.f32 %v2619, %v2634
    %v2636 = vrcp.pop %v2629
    %v2637 = vmul.f32 %v2621, %v2636
    %v2638 = vrcp.pop %v2631
    %v2639 = vmul.f32 %v2623, %v2638
    %2640 = vst [vmem:[%s9] sm:$0xff] %v2633
    %2641 = vst [vmem:[%s9 + $0x8] sm:$0xff] %v2635
    %2642 = vst [vmem:[%s9 + $0x10] sm:$0xff] %v2637
    %2643 = vst [vmem:[%s9 + $0x18] sm:$0xff] %v2639
    // Predicated region
    $region62: #{mlp_forward.1} parent=1 // pred_check
      _
    $region63: #{mlp_forward.1} parent=1 // pred_check_branch
      %2645 = sbr.rel (0) target = $region65
    $region64: #{mlp_forward.1} parent=1 // pred_region
      _
    $region65: #{mlp_forward.1} parent=1 // pred_fallthru
      _
    // Predicated region
    $region66: #{mlp_forward.1} parent=1 // pred_check
      _
    $region67: #{mlp_forward.1} parent=1 // pred_check_branch
      %2647 = sbr.rel (0) target = $region69
    $region68: #{mlp_forward.1} parent=1 // pred_region
      _
    $region69: #{mlp_forward.1} parent=1 // pred_fallthru
      _
    %2648 = vsyncpa [#allocation3], 1
    %2649 = vsyncpa [#allocation5], 1
    %2650 = vsyncpa [#allocation8], 1
    %2651 = vsyncpa [#allocation11], 1

</llo_original>
